<compile_context>
chip_gen: v7x
topology: tpu7x:2x2x1
jax: 0.10.0
libtpu: 0.0.40
codegen_flags: <defaults>
</compile_context>

<pallas_src>
import functools
import math

import jax
import jax.numpy as jnp
from jax.experimental import pallas as pl
from jax.experimental.pallas import tpu as pltpu


# ---------------------------------------------------------------------------
# Kernel bodies
# ---------------------------------------------------------------------------
def _attend(q, k, v, scale, mask=None):
    """Batched (G, T, d) attention for one head-group, fully on-chip.

    q/k/v are in their native dtype (bf16 goes straight to the MXU); scores,
    softmax statistics and both accumulators are f32.
    """
    # scores = q @ k^T  -- contraction expressed directly, no transpose.
    s = jax.lax.dot_general(
        q, k,
        dimension_numbers=(((2,), (2,)), ((0,), (0,))),
        preferred_element_type=jnp.float32,
    )
    s = s * scale
    if mask is not None:
        # masked_fill(mask == 0, -1e9); mask is int8, broadcast over heads if
        # it is the shared (1, T, T) block.
        s = jnp.where(mask == 0, jnp.float32(-1e9), s)

    # Numerically-stable softmax along the key axis (matches nn.Softmax(-1)).
    s = s - jnp.max(s, axis=-1, keepdims=True)
    p = jnp.exp(s)
    denom = jnp.sum(p, axis=-1, keepdims=True)
    inv = pl.reciprocal(denom, approx=True)     # EUP vrcp (otherwise-idle slot)
    inv = inv * (2.0 - denom * inv)             # one Newton step -> f32-exact
    p = p * inv

    # PV matmul: feed the MXU with p cast back to v's dtype (bf16-friendly),
    # accumulate in f32.
    return jax.lax.dot_general(
        p.astype(v.dtype), v,
        dimension_numbers=(((2,), (1,)), ((0,), (0,))),
        preferred_element_type=jnp.float32,
    )


def _pack_lane_dense(o, o_ref, group):
    # (G, T, d) -> (T, G*d) lane-dense slab: one unmasked full-width store.
    slab = jnp.concatenate([o[g] for g in range(group)], axis=-1)
    o_ref[0] = slab.astype(o_ref.dtype)


def _attn_kernel(q_ref, k_ref, v_ref, o_ref, *, scale, group):
    o = _attend(q_ref[...], k_ref[...], v_ref[...], scale)
    _pack_lane_dense(o, o_ref, group)


def _attn_kernel_masked(q_ref, k_ref, v_ref, m_ref, o_ref, *, scale, group):
    o = _attend(q_ref[...], k_ref[...], v_ref[...], scale, mask=m_ref[...])
    _pack_lane_dense(o, o_ref, group)


# ---------------------------------------------------------------------------
# Host-side helpers
# ---------------------------------------------------------------------------
def _block_bytes(g, t, d, itemsize, has_mask):
    """Rough per-grid-step VMEM footprint estimate for group size g."""
    lane = 128
    d_pad = -(-d // lane) * lane
    t_pad = -(-t // lane) * lane
    n = 3 * g * t * d_pad * itemsize * 2        # q, k, v blocks (double-buffered)
    n += t * g * d * itemsize * 2               # lane-dense output slab
    n += 2 * g * t * t_pad * 4                  # f32 scores + exp temporaries
    if has_mask:
        n += g * t * t_pad * 2                  # int8 mask block
    return n


def _pick_group(bh, t, d, itemsize, has_mask, budget=8 * 1024 * 1024):
    """Largest divisor of bh (capped at 64) whose working set fits the budget."""
    best = 1
    for g in range(1, min(bh, 64) + 1):
        if bh % g == 0 and _block_bytes(g, t, d, itemsize, has_mask) <= budget:
            best = g
    return best


def self_attention(q, k, v, mask=None):
    """Pallas TPU implementation of SelfAttention.forward.

    q, k, v: (B, H, T, d). mask (optional): broadcastable to (B, H, T, T),
    where 0 entries are masked out (filled with -1e9 before softmax).
    Returns: (B, H, T, d), same dtype as q.
    """
    B, H, T, d = q.shape
    BH = B * H
    scale = 1.0 / math.sqrt(d)
    itemsize = jnp.dtype(q.dtype).itemsize

    qf = q.reshape(BH, T, d)
    kf = k.reshape(BH, T, d)
    vf = v.reshape(BH, T, d)

    # --- mask preprocessing: int8, avoid HBM broadcast for shared masks -----
    mask_arr = None
    shared_mask = False
    if mask is not None:
        m = (mask != 0).astype(jnp.int8)          # only the ==0 predicate matters
        if m.ndim < 4:
            m = m.reshape((1,) * (4 - m.ndim) + m.shape)
        shared_mask = (m.shape[0] == 1) and (m.shape[1] == 1)
        if shared_mask:
            # One (T, T) mask shared by every (batch, head): keep a single copy.
            mask_arr = jnp.broadcast_to(m[0, 0], (T, T)).reshape(1, T, T)
        else:
            mask_arr = jnp.broadcast_to(m, (B, H, T, T)).reshape(BH, T, T)

    # --- head grouping & VMEM budget -----------------------------------------
    G = _pick_group(BH, T, d, itemsize, mask is not None)
    nG = BH // G
    est = _block_bytes(G, T, d, itemsize, mask is not None)
    vmem_limit = None
    if est > 24 * 1024 * 1024:
        # Monolithic (T, T) scores outgrow the default scoped-VMEM limit;
        # raise it, staying below v7x's 64 MiB physical VMEM.
        vmem_limit = min(int(est * 3 // 2), 56 * 1024 * 1024)

    cp_kwargs = dict(dimension_semantics=("parallel",))
    if vmem_limit is not None:
        cp_kwargs["vmem_limit_bytes"] = vmem_limit
    cparams = pltpu.CompilerParams(**cp_kwargs)

    # --- specs ----------------------------------------------------------------
    qkv_spec = pl.BlockSpec((G, T, d), lambda i: (i, 0, 0))
    out_spec = pl.BlockSpec((1, T, G * d), lambda i: (i, 0, 0))
    out_shape = jax.ShapeDtypeStruct((nG, T, G * d), q.dtype)

    flops = 4 * BH * T * T * d                 # two matmuls, 2*T*T*d each per head
    transcendentals = BH * T * T               # exp in softmax
    bytes_accessed = 4 * BH * T * d * itemsize # q, k, v in + out
    if mask_arr is not None:
        bytes_accessed += int(mask_arr.size)   # int8 mask
    cost = pl.CostEstimate(flops=flops, transcendentals=transcendentals,
                           bytes_accessed=bytes_accessed)

    if mask is None:
        kernel = functools.partial(_attn_kernel, scale=scale, group=G)
        out = pl.pallas_call(
            kernel,
            out_shape=out_shape,
            grid_spec=pltpu.PrefetchScalarGridSpec(
                num_scalar_prefetch=0,
                grid=(nG,),
                in_specs=[qkv_spec, qkv_spec, qkv_spec],
                out_specs=out_spec,
            ),
            compiler_params=cparams,
            cost_estimate=cost,
        )(qf, kf, vf)
    else:
        if shared_mask:
            m_spec = pl.BlockSpec((1, T, T), lambda i: (0, 0, 0))
        else:
            m_spec = pl.BlockSpec((G, T, T), lambda i: (i, 0, 0))
        kernel = functools.partial(_attn_kernel_masked, scale=scale, group=G)
        out = pl.pallas_call(
            kernel,
            out_shape=out_shape,
            grid_spec=pltpu.PrefetchScalarGridSpec(
                num_scalar_prefetch=0,
                grid=(nG,),
                in_specs=[qkv_spec, qkv_spec, qkv_spec, m_spec],
                out_specs=out_spec,
            ),
            compiler_params=cparams,
            cost_estimate=cost,
        )(qf, kf, vf, mask_arr)

    # (nG, T, G*d) lane-dense slab -> (B, H, T, d): pure layout plumbing.
    out = out.reshape(nG, T, G, d)
    out = jnp.transpose(out, (0, 2, 1, 3))
    return out.reshape(B, H, T, d)


# ---------------------------------------------------------------------------
# Reference + self-test
# ---------------------------------------------------------------------------
def _reference(q, k, v, mask=None):
    d = q.shape[-1]
    att = jnp.einsum("bhtd,bhsd->bhts",
                     q.astype(jnp.float32), k.astype(jnp.float32)) / d ** 0.5
    if mask is not None:
        att = jnp.where(mask == 0, -1e9, att)
    att = jax.nn.softmax(att, axis=-1)
    return jnp.einsum("bhts,bhsd->bhtd", att, v.astype(jnp.float32))


if __name__ == "__main__":
    key = jax.random.PRNGKey(0)
    B, H, T, d = 2, 4, 8, 32
    kq, kk, kv, km = jax.random.split(key, 4)
    q = jax.random.normal(kq, (B, H, T, d), dtype=jnp.float32)
    k = jax.random.normal(kk, (B, H, T, d), dtype=jnp.float32)
    v = jax.random.normal(kv, (B, H, T, d), dtype=jnp.float32)

    # 1) unmasked path
    out = jax.block_until_ready(self_attention(q, k, v))
    ref = _reference(q, k, v)
    assert jnp.allclose(out, ref, atol=1e-4, rtol=1e-4), "unmasked mismatch"

    # 2) shared (causal-style) mask -> (1, T, T) shared-mask path (no HBM broadcast)
    mask = jnp.tril(jnp.ones((T, T), dtype=jnp.int32))[None, None]
    out_m = jax.block_until_ready(self_attention(q, k, v, mask))
    ref_m = _reference(q, k, v, mask)
    assert jnp.allclose(out_m, ref_m, atol=1e-4, rtol=1e-4), "shared-mask mismatch"

    # 3) per-(batch, head) mask path (int8, block aligned with the head group)
    mask_bh = (jax.random.uniform(km, (B, H, T, T)) > 0.3).astype(jnp.int32)
    mask_bh = jnp.maximum(mask_bh, jnp.eye(T, dtype=jnp.int32)[None, None])
    out_b = jax.block_until_ready(self_attention(q, k, v, mask_bh))
    ref_b = _reference(q, k, v, mask_bh)
    assert jnp.allclose(out_b, ref_b, atol=1e-4, rtol=1e-4), "per-head-mask mismatch"

    # 4) bf16 path: native bf16 operands feed the MXU directly
    qb, kb, vb = (x.astype(jnp.bfloat16) for x in (q, k, v))
    out_bf = jax.block_until_ready(self_attention(qb, kb, vb))
    ref_bf = _reference(qb, kb, vb)
    assert jnp.allclose(out_bf.astype(jnp.float32), ref_bf, atol=5e-2, rtol=5e-2), \
        "bf16 mismatch"

    print("KERNEL_OK")
</pallas_src>

<mosaic_0001>
module attributes {stable_mosaic.version = 11 : i64} {
  func.func @_attn_kernel(%arg0: i32, %arg1: memref<8x8x32xf32, #tpu.memory_space<vmem>>, %arg2: memref<8x8x32xf32, #tpu.memory_space<vmem>>, %arg3: memref<8x8x32xf32, #tpu.memory_space<vmem>>, %arg4: memref<1x8x256xf32, #tpu.memory_space<vmem>>) attributes {dimension_semantics = [#tpu.dimension_semantics<parallel>], iteration_bounds = array<i64: 1>, scalar_prefetch = 0 : i64, scratch_operands = 0 : i64, tpu.core_type = #tpu.core_type<tc>, window_params = [{transform_indices = @transform_0, window_bounds = array<i64: 8, 8, 32>}, {transform_indices = @transform_1, window_bounds = array<i64: 8, 8, 32>}, {transform_indices = @transform_2, window_bounds = array<i64: 8, 8, 32>}, {transform_indices = @transform_3, window_bounds = array<i64: 1, 8, 256>}]} {
    %c0 = arith.constant 0 : index
    %c0_0 = arith.constant 0 : index
    %c0_1 = arith.constant 0 : index
    %0 = vector.load %arg1[%c0, %c0_0, %c0_1] : memref<8x8x32xf32, #tpu.memory_space<vmem>>, vector<8x8x32xf32>
    %c0_2 = arith.constant 0 : index
    %c0_3 = arith.constant 0 : index
    %c0_4 = arith.constant 0 : index
    %1 = vector.load %arg2[%c0_2, %c0_3, %c0_4] : memref<8x8x32xf32, #tpu.memory_space<vmem>>, vector<8x8x32xf32>
    %c0_5 = arith.constant 0 : index
    %c0_6 = arith.constant 0 : index
    %c0_7 = arith.constant 0 : index
    %2 = vector.load %arg3[%c0_5, %c0_6, %c0_7] : memref<8x8x32xf32, #tpu.memory_space<vmem>>, vector<8x8x32xf32>
    %cst = arith.constant dense<0.000000e+00> : vector<8x8x8xf32>
    %3 = tpu.matmul %0, %1, %cst {dimension_numbers = #tpu.dot_dimension_numbers<[2], [2], [1], [1], [0, 0, 0, 1, 1, 1], [0], [0]>} : vector<8x8x32xf32>, vector<8x8x32xf32>, vector<8x8x8xf32> -> vector<8x8x8xf32>
    %cst_8 = arith.constant 0.176776692 : f32
    %4 = vector.broadcast %cst_8 : f32 to vector<8x8x8xf32>
    %5 = arith.mulf %3, %4 : vector<8x8x8xf32>
    %cst_9 = arith.constant dense<0xFF800000> : vector<8x8xf32>
    %6 = vector.multi_reduction <maximumf>, %5, %cst_9 [2] : vector<8x8x8xf32> to vector<8x8xf32>
    %7 = vector.shape_cast %6 : vector<8x8xf32> to vector<8x8x1xf32>
    %8 = vector.broadcast %7 : vector<8x8x1xf32> to vector<8x8x8xf32>
    %9 = arith.subf %5, %8 : vector<8x8x8xf32>
    %10 = math.exp %9 : vector<8x8x8xf32>
    %cst_10 = arith.constant dense<0.000000e+00> : vector<8x8xf32>
    %11 = vector.multi_reduction <add>, %10, %cst_10 [2] : vector<8x8x8xf32> to vector<8x8xf32>
    %12 = vector.shape_cast %11 : vector<8x8xf32> to vector<8x8x1xf32>
    %13 = tpu.reciprocal %12 {approx = true} : vector<8x8x1xf32> -> vector<8x8x1xf32>
    %14 = arith.mulf %12, %13 : vector<8x8x1xf32>
    %cst_11 = arith.constant 2.000000e+00 : f32
    %15 = vector.broadcast %cst_11 : f32 to vector<8x8x1xf32>
    %16 = arith.subf %15, %14 : vector<8x8x1xf32>
    %17 = arith.mulf %13, %16 : vector<8x8x1xf32>
    %18 = vector.broadcast %17 : vector<8x8x1xf32> to vector<8x8x8xf32>
    %19 = arith.mulf %10, %18 : vector<8x8x8xf32>
    %cst_12 = arith.constant dense<0.000000e+00> : vector<8x8x32xf32>
    %20 = tpu.matmul %19, %2, %cst_12 {dimension_numbers = #tpu.dot_dimension_numbers<[2], [1], [1], [2], [0, 0, 0, 1, 1, 2], [0], [0]>} : vector<8x8x8xf32>, vector<8x8x32xf32>, vector<8x8x32xf32> -> vector<8x8x32xf32>
    %21 = vector.extract_strided_slice %20 {offsets = [0, 0, 0], sizes = [1, 8, 32], strides = [1, 1, 1]} : vector<8x8x32xf32> to vector<1x8x32xf32>
    %22 = vector.shape_cast %21 : vector<1x8x32xf32> to vector<8x32xf32>
    %23 = vector.extract_strided_slice %20 {offsets = [1, 0, 0], sizes = [1, 8, 32], strides = [1, 1, 1]} : vector<8x8x32xf32> to vector<1x8x32xf32>
    %24 = vector.shape_cast %23 : vector<1x8x32xf32> to vector<8x32xf32>
    %25 = vector.extract_strided_slice %20 {offsets = [2, 0, 0], sizes = [1, 8, 32], strides = [1, 1, 1]} : vector<8x8x32xf32> to vector<1x8x32xf32>
    %26 = vector.shape_cast %25 : vector<1x8x32xf32> to vector<8x32xf32>
    %27 = vector.extract_strided_slice %20 {offsets = [3, 0, 0], sizes = [1, 8, 32], strides = [1, 1, 1]} : vector<8x8x32xf32> to vector<1x8x32xf32>
    %28 = vector.shape_cast %27 : vector<1x8x32xf32> to vector<8x32xf32>
    %29 = vector.extract_strided_slice %20 {offsets = [4, 0, 0], sizes = [1, 8, 32], strides = [1, 1, 1]} : vector<8x8x32xf32> to vector<1x8x32xf32>
    %30 = vector.shape_cast %29 : vector<1x8x32xf32> to vector<8x32xf32>
    %31 = vector.extract_strided_slice %20 {offsets = [5, 0, 0], sizes = [1, 8, 32], strides = [1, 1, 1]} : vector<8x8x32xf32> to vector<1x8x32xf32>
    %32 = vector.shape_cast %31 : vector<1x8x32xf32> to vector<8x32xf32>
    %33 = vector.extract_strided_slice %20 {offsets = [6, 0, 0], sizes = [1, 8, 32], strides = [1, 1, 1]} : vector<8x8x32xf32> to vector<1x8x32xf32>
    %34 = vector.shape_cast %33 : vector<1x8x32xf32> to vector<8x32xf32>
    %35 = vector.extract_strided_slice %20 {offsets = [7, 0, 0], sizes = [1, 8, 32], strides = [1, 1, 1]} : vector<8x8x32xf32> to vector<1x8x32xf32>
    %36 = vector.shape_cast %35 : vector<1x8x32xf32> to vector<8x32xf32>
    %37 = tpu.concatenate %22, %24, %26, %28, %30, %32, %34, %36 in 1 : vector<8x32xf32>, vector<8x32xf32>, vector<8x32xf32>, vector<8x32xf32>, vector<8x32xf32>, vector<8x32xf32>, vector<8x32xf32>, vector<8x32xf32> -> vector<8x256xf32>
    %c0_13 = arith.constant 0 : index
    %c0_14 = arith.constant 0 : index
    %c0_15 = arith.constant 0 : index
    %38 = vector.load %arg4[%c0_13, %c0_14, %c0_15] : memref<1x8x256xf32, #tpu.memory_space<vmem>>, vector<1x8x256xf32>
    %39 = vector.shape_cast %38 : vector<1x8x256xf32> to vector<8x256xf32>
    %40 = vector.shape_cast %37 : vector<8x256xf32> to vector<1x8x256xf32>
    tpu.vector_store %arg4[%c0_13, %c0_14, %c0_15], %40 {strides = array<i32>} : memref<1x8x256xf32, #tpu.memory_space<vmem>>, vector<1x8x256xf32>,
    return
  }
  func.func @transform_0(%arg0: i32) -> (i32, i32, i32) {
    %c0_i32 = arith.constant 0 : i32
    %c0_i32_0 = arith.constant 0 : i32
    %c0_i32_1 = arith.constant 0 : i32
    return %arg0, %c0_i32, %c0_i32_0 : i32, i32, i32
  }
  func.func @transform_1(%arg0: i32) -> (i32, i32, i32) {
    %c0_i32 = arith.constant 0 : i32
    %c0_i32_0 = arith.constant 0 : i32
    %c0_i32_1 = arith.constant 0 : i32
    return %arg0, %c0_i32, %c0_i32_0 : i32, i32, i32
  }
  func.func @transform_2(%arg0: i32) -> (i32, i32, i32) {
    %c0_i32 = arith.constant 0 : i32
    %c0_i32_0 = arith.constant 0 : i32
    %c0_i32_1 = arith.constant 0 : i32
    return %arg0, %c0_i32, %c0_i32_0 : i32, i32, i32
  }
  func.func @transform_3(%arg0: i32) -> (i32, i32, i32) {
    %c0_i32 = arith.constant 0 : i32
    %c0_i32_0 = arith.constant 0 : i32
    %c0_i32_1 = arith.constant 0 : i32
    return %arg0, %c0_i32, %c0_i32_0 : i32, i32, i32
  }
}

</mosaic_0001>

<llo_original>
// kernel: tpu_custom_call.1
$region0: #{tpu_custom_call.1}
  #allocation0 [shape = 'u32[]', space=smem, size = 0x4, offset = 0x4, fixed_abs, tag = 'smem constant byte address 0x4 - core index']
  #allocation1 [shape = 'u32[144,128]{1,0:T(1,128)}', space=vmem, size = 0x12000, scoped, tag = 'internal scratch']
  %s0 = inlined_call_operand.hbm [shape: f32[8,8,32], index: 0, kind: input, shape index: {}]
  %s1 = inlined_call_operand.hbm [shape: f32[8,8,32], index: 1, kind: input, shape index: {}]
  %s2 = inlined_call_operand.hbm [shape: f32[8,8,32], index: 2, kind: input, shape index: {}]
  %s3 = inlined_call_operand.hbm [shape: f32[1,8,256], index: 3, kind: output, shape index: {}]
  %s4 = sld [smem:[#allocation0]]
  $region34: #{tpu_custom_call.1} parent=0
    _
  %s6 = ssub.s32 1, %s4
  %s7 = scalar_select 0, %s6, %s4
  $region1: #{tpu_custom_call.1} parent=0
    #allocation2 [shape = 'u8[32768]{0}', space=vmem, size = 0x8000, scoped, tag = 'input window, operand 0, single buffered']
    #allocation3 [shape = 's32[1]{0}', space=sflag, size = 0x4, scoped, tag = 'scoped memory for tpu_custom_call.1']
    #allocation4 [shape = 's32[1]{0}', space=sflag, size = 0x4, scoped, tag = 'scoped memory for tpu_custom_call.1']
    #allocation5 [shape = 'u8[32768]{0}', space=vmem, size = 0x8000, scoped, tag = 'input window, operand 1, single buffered']
    #allocation6 [shape = 's32[1]{0}', space=sflag, size = 0x4, scoped, tag = 'scoped memory for tpu_custom_call.1']
    #allocation7 [shape = 'u8[32768]{0}', space=vmem, size = 0x8000, scoped, tag = 'input window, operand 2, single buffered']
    #allocation8 [shape = 'u8[8192]{0}', space=vmem, size = 0x2000, scoped, tag = 'output window, operand 0, single buffered']
    %8 = vsyncpa [#allocation3], 0
    %9 = vsyncpa [#allocation6], 0
    %10 = vsyncpa [#allocation4], 0
    // Predicated region
    $region2: #{tpu_custom_call.1} parent=1 // pred_check
      _
    $region3: #{tpu_custom_call.1} parent=1 // pred_check_branch
      %12 = sbr.rel (0) target = $region5
    $region4: #{tpu_custom_call.1} parent=1 // pred_region
      %s14 = ssub.s32 1024, 1024
      %15 = vsyncadd [#allocation3], %s14
      %s16 = sshll.u32 [#allocation2], 4
      %s17 = int_to_ptr.vmem [resolvable:$true] %s16
      %22 = dma.hbm_to_vmem [thread:$0]  %s0, 1024, %s17, [#allocation3], 128, 128, 8
    $region5: #{tpu_custom_call.1} parent=1 // pred_fallthru
      _
    // Predicated region
    $region6: #{tpu_custom_call.1} parent=1 // pred_check
      _
    $region7: #{tpu_custom_call.1} parent=1 // pred_check_branch
      %24 = sbr.rel (0) target = $region9
    $region8: #{tpu_custom_call.1} parent=1 // pred_region
      %s26 = ssub.s32 1024, 1024
      %27 = vsyncadd [#allocation6], %s26
      %s28 = sshll.u32 [#allocation5], 4
      %s29 = int_to_ptr.vmem [resolvable:$true] %s28
      %34 = dma.hbm_to_vmem [thread:$0]  %s1, 1024, %s29, [#allocation6], 128, 128, 8
    $region9: #{tpu_custom_call.1} parent=1 // pred_fallthru
      _
    // Predicated region
    $region10: #{tpu_custom_call.1} parent=1 // pred_check
      _
    $region11: #{tpu_custom_call.1} parent=1 // pred_check_branch
      %36 = sbr.rel (0) target = $region13
    $region12: #{tpu_custom_call.1} parent=1 // pred_region
      %s38 = ssub.s32 1024, 1024
      %39 = vsyncadd [#allocation6], %s38
      %s40 = sshll.u32 [#allocation7], 4
      %s41 = int_to_ptr.vmem [resolvable:$true] %s40
      %46 = dma.hbm_to_vmem [thread:$0]  %s2, 1024, %s41, [#allocation6], 128, 128, 8
    $region13: #{tpu_custom_call.1} parent=1 // pred_fallthru
      _
    // Predicated region
    $region14: #{tpu_custom_call.1} parent=1 // pred_check
      _
    $region15: #{tpu_custom_call.1} parent=1 // pred_check_branch
      %48 = sbr.rel (0) target = $region17
    $region16: #{tpu_custom_call.1} parent=1 // pred_region
      %49 = dma.done [#allocation3], 1024
    $region17: #{tpu_custom_call.1} parent=1 // pred_fallthru
      _
    // Predicated region
    $region18: #{tpu_custom_call.1} parent=1 // pred_check
      _
    $region19: #{tpu_custom_call.1} parent=1 // pred_check_branch
      %51 = sbr.rel (0) target = $region21
    $region20: #{tpu_custom_call.1} parent=1 // pred_region
      %52 = dma.done [#allocation6], 1024
    $region21: #{tpu_custom_call.1} parent=1 // pred_fallthru
      _
    // Predicated region
    $region22: #{tpu_custom_call.1} parent=1 // pred_check
      _
    $region23: #{tpu_custom_call.1} parent=1 // pred_check_branch
      %54 = sbr.rel (0) target = $region25
    $region24: #{tpu_custom_call.1} parent=1 // pred_region
      %55 = dma.done [#allocation6], 1024
    $region25: #{tpu_custom_call.1} parent=1 // pred_fallthru
      _
    %v56 = vld [vmem:[#allocation2] sm:$0xff]
    %v57 = vld [vmem:[#allocation2 + $0x8] sm:$0xff]
    %v58 = vld [vmem:[#allocation2 + $0x10] sm:$0xff]
    %v59 = vld [vmem:[#allocation2 + $0x18] sm:$0xff]
    %v60 = vld [vmem:[#allocation2 + $0x20] sm:$0xff]
    %v61 = vld [vmem:[#allocation2 + $0x28] sm:$0xff]
    %v62 = vld [vmem:[#allocation2 + $0x30] sm:$0xff]
    %v63 = vld [vmem:[#allocation2 + $0x38] sm:$0xff]
    %v64 = vld [vmem:[#allocation5] sm:$0xff]
    %v65 = vld [vmem:[#allocation5 + $0x8] sm:$0xff]
    %v66 = vld [vmem:[#allocation5 + $0x10] sm:$0xff]
    %v67 = vld [vmem:[#allocation5 + $0x18] sm:$0xff]
    %v68 = vld [vmem:[#allocation5 + $0x20] sm:$0xff]
    %v69 = vld [vmem:[#allocation5 + $0x28] sm:$0xff]
    %v70 = vld [vmem:[#allocation5 + $0x30] sm:$0xff]
    %v71 = vld [vmem:[#allocation5 + $0x38] sm:$0xff]
    %v72 = vld [vmem:[#allocation7] sm:$0xff]
    %v73 = vld [vmem:[#allocation7 + $0x8] sm:$0xff]
    %v74 = vld [vmem:[#allocation7 + $0x10] sm:$0xff]
    %v75 = vld [vmem:[#allocation7 + $0x18] sm:$0xff]
    %v76 = vld [vmem:[#allocation7 + $0x20] sm:$0xff]
    %v77 = vld [vmem:[#allocation7 + $0x28] sm:$0xff]
    %v78 = vld [vmem:[#allocation7 + $0x30] sm:$0xff]
    %v79 = vld [vmem:[#allocation7 + $0x38] sm:$0xff]
    %vm80 = vcmask 261120
    %v82 = vsel %vm80, %v56, 0
    %v85 = vsel %vm80, %v64, 0
    %87 = vmatprep.subr.mxu0 0.0
    %88 = vmatpush1.xpose.msra.mxu0 %v85
    %89 = vmatprep.subr.mxu0 0.0
    %90 = vmatpush1.xpose.msra.mxu0 0.0
    %91 = vmatprep.subr.mxu0 0.0
    %92 = vmatpush1.xpose.msra.mxu0 0.0
    %93 = vmatprep.subr.mxu0 0.0
    %94 = vmatpush1.xpose.msra.mxu0 0.0
    %95 = vmatprep.subr.mxu0 0.0
    %96 = vmatpush1.xpose.msra.mxu0 0.0
    %97 = vmatprep.subr.mxu0 0.0
    %98 = vmatpush1.xpose.msra.mxu0 0.0
    %99 = vmatprep.subr.mxu0 0.0
    %100 = vmatpush1.xpose.msra.mxu0 0.0
    %101 = vmatprep.subr.mxu0 0.0
    %102 = vmatpush1.xpose.msra.mxu0 0.0
    %103 = vmatprep.subr.mxu0 0.0
    %104 = vmatpush1.xpose.msra.mxu0 0.0
    %105 = vmatprep.subr.mxu0 0.0
    %106 = vmatpush1.xpose.msra.mxu0 0.0
    %107 = vmatprep.subr.mxu0 0.0
    %108 = vmatpush1.xpose.msra.mxu0 0.0
    %109 = vmatprep.subr.mxu0 0.0
    %110 = vmatpush1.xpose.msra.mxu0 0.0
    %111 = vmatprep.subr.mxu0 0.0
    %112 = vmatpush1.xpose.msra.mxu0 0.0
    %113 = vmatprep.subr.mxu0 0.0
    %114 = vmatpush1.xpose.msra.mxu0 0.0
    %115 = vmatprep.subr.mxu0 0.0
    %116 = vmatpush1.xpose.msra.mxu0 0.0
    %117 = vmatprep.subr.mxu0 0.0
    %118 = vmatpush1.xpose.msra.mxu0 0.0
    %119 = vmatprep.subr.mxu0 0.0
    %120 = vmatpush1.xpose.msra.mxu0 0.0
    %121 = vmatprep.subr.mxu0 0.0
    %122 = vmatpush1.xpose.msra.mxu0 0.0
    %123 = vmatprep.subr.mxu0 0.0
    %124 = vmatpush1.xpose.msra.mxu0 0.0
    %125 = vmatprep.subr.mxu0 0.0
    %126 = vmatpush1.xpose.msra.mxu0 0.0
    %127 = vmatprep.subr.mxu0 0.0
    %128 = vmatpush1.xpose.msra.mxu0 0.0
    %129 = vmatprep.subr.mxu0 0.0
    %130 = vmatpush1.xpose.msra.mxu0 0.0
    %131 = vmatprep.subr.mxu0 0.0
    %132 = vmatpush1.xpose.msra.mxu0 0.0
    %133 = vmatprep.subr.mxu0 0.0
    %134 = vmatpush1.xpose.msra.mxu0 0.0
    %135 = vmatprep.subr.mxu0 0.0
    %136 = vmatpush1.xpose.msra.mxu0 0.0
    %137 = vmatprep.subr.mxu0 0.0
    %138 = vmatpush1.xpose.msra.mxu0 0.0
    %139 = vmatprep.subr.mxu0 0.0
    %140 = vmatpush1.xpose.msra.mxu0 0.0
    %141 = vmatprep.subr.mxu0 0.0
    %142 = vmatpush1.xpose.msra.mxu0 0.0
    %143 = vmatprep.subr.mxu0 0.0
    %144 = vmatpush1.xpose.msra.mxu0 0.0
    %145 = vmatprep.subr.mxu0 0.0
    %146 = vmatpush1.xpose.msra.mxu0 0.0
    %147 = vmatprep.subr.mxu0 0.0
    %148 = vmatpush1.xpose.msra.mxu0 0.0
    %149 = vmatprep.subr.mxu0 0.0
    %150 = vmatpush1.xpose.msra.mxu0 0.0
    %151 = vmatprep.mubr.f32.mxu0 0.0
    %152 = vmatmul.mubr.f32.gmra.mrb[0].mxu0 %v82
    %v153 = vpop.f32.mrb[0].mxu0
    %v154 = vadd.f32 0.0, %v153
    %v155 = vpop.f32.mrb[0].mxu0
    %156 = vdwg.mxu0
    %v158 = vsel %vm80, %v57, 0
    %v161 = vsel %vm80, %v65, 0
    %163 = vmatprep.subr.mxu0 0.0
    %164 = vmatpush1.xpose.msra.mxu0 %v161
    %165 = vmatprep.subr.mxu0 0.0
    %166 = vmatpush1.xpose.msra.mxu0 0.0
    %167 = vmatprep.subr.mxu0 0.0
    %168 = vmatpush1.xpose.msra.mxu0 0.0
    %169 = vmatprep.subr.mxu0 0.0
    %170 = vmatpush1.xpose.msra.mxu0 0.0
    %171 = vmatprep.subr.mxu0 0.0
    %172 = vmatpush1.xpose.msra.mxu0 0.0
    %173 = vmatprep.subr.mxu0 0.0
    %174 = vmatpush1.xpose.msra.mxu0 0.0
    %175 = vmatprep.subr.mxu0 0.0
    %176 = vmatpush1.xpose.msra.mxu0 0.0
    %177 = vmatprep.subr.mxu0 0.0
    %178 = vmatpush1.xpose.msra.mxu0 0.0
    %179 = vmatprep.subr.mxu0 0.0
    %180 = vmatpush1.xpose.msra.mxu0 0.0
    %181 = vmatprep.subr.mxu0 0.0
    %182 = vmatpush1.xpose.msra.mxu0 0.0
    %183 = vmatprep.subr.mxu0 0.0
    %184 = vmatpush1.xpose.msra.mxu0 0.0
    %185 = vmatprep.subr.mxu0 0.0
    %186 = vmatpush1.xpose.msra.mxu0 0.0
    %187 = vmatprep.subr.mxu0 0.0
    %188 = vmatpush1.xpose.msra.mxu0 0.0
    %189 = vmatprep.subr.mxu0 0.0
    %190 = vmatpush1.xpose.msra.mxu0 0.0
    %191 = vmatprep.subr.mxu0 0.0
    %192 = vmatpush1.xpose.msra.mxu0 0.0
    %193 = vmatprep.subr.mxu0 0.0
    %194 = vmatpush1.xpose.msra.mxu0 0.0
    %195 = vmatprep.subr.mxu0 0.0
    %196 = vmatpush1.xpose.msra.mxu0 0.0
    %197 = vmatprep.subr.mxu0 0.0
    %198 = vmatpush1.xpose.msra.mxu0 0.0
    %199 = vmatprep.subr.mxu0 0.0
    %200 = vmatpush1.xpose.msra.mxu0 0.0
    %201 = vmatprep.subr.mxu0 0.0
    %202 = vmatpush1.xpose.msra.mxu0 0.0
    %203 = vmatprep.subr.mxu0 0.0
    %204 = vmatpush1.xpose.msra.mxu0 0.0
    %205 = vmatprep.subr.mxu0 0.0
    %206 = vmatpush1.xpose.msra.mxu0 0.0
    %207 = vmatprep.subr.mxu0 0.0
    %208 = vmatpush1.xpose.msra.mxu0 0.0
    %209 = vmatprep.subr.mxu0 0.0
    %210 = vmatpush1.xpose.msra.mxu0 0.0
    %211 = vmatprep.subr.mxu0 0.0
    %212 = vmatpush1.xpose.msra.mxu0 0.0
    %213 = vmatprep.subr.mxu0 0.0
    %214 = vmatpush1.xpose.msra.mxu0 0.0
    %215 = vmatprep.subr.mxu0 0.0
    %216 = vmatpush1.xpose.msra.mxu0 0.0
    %217 = vmatprep.subr.mxu0 0.0
    %218 = vmatpush1.xpose.msra.mxu0 0.0
    %219 = vmatprep.subr.mxu0 0.0
    %220 = vmatpush1.xpose.msra.mxu0 0.0
    %221 = vmatprep.subr.mxu0 0.0
    %222 = vmatpush1.xpose.msra.mxu0 0.0
    %223 = vmatprep.subr.mxu0 0.0
    %224 = vmatpush1.xpose.msra.mxu0 0.0
    %225 = vmatprep.subr.mxu0 0.0
    %226 = vmatpush1.xpose.msra.mxu0 0.0
    %227 = vmatprep.mubr.f32.mxu0 0.0
    %228 = vmatmul.mubr.f32.gmra.mrb[0].mxu0 %v158
    %v229 = vpop.f32.mrb[0].mxu0
    %v230 = vadd.f32 0.0, %v229
    %v231 = vpop.f32.mrb[0].mxu0
    %232 = vdwg.mxu0
    %v234 = vsel %vm80, %v58, 0
    %v237 = vsel %vm80, %v66, 0
    %239 = vmatprep.subr.mxu0 0.0
    %240 = vmatpush1.xpose.msra.mxu0 %v237
    %241 = vmatprep.subr.mxu0 0.0
    %242 = vmatpush1.xpose.msra.mxu0 0.0
    %243 = vmatprep.subr.mxu0 0.0
    %244 = vmatpush1.xpose.msra.mxu0 0.0
    %245 = vmatprep.subr.mxu0 0.0
    %246 = vmatpush1.xpose.msra.mxu0 0.0
    %247 = vmatprep.subr.mxu0 0.0
    %248 = vmatpush1.xpose.msra.mxu0 0.0
    %249 = vmatprep.subr.mxu0 0.0
    %250 = vmatpush1.xpose.msra.mxu0 0.0
    %251 = vmatprep.subr.mxu0 0.0
    %252 = vmatpush1.xpose.msra.mxu0 0.0
    %253 = vmatprep.subr.mxu0 0.0
    %254 = vmatpush1.xpose.msra.mxu0 0.0
    %255 = vmatprep.subr.mxu0 0.0
    %256 = vmatpush1.xpose.msra.mxu0 0.0
    %257 = vmatprep.subr.mxu0 0.0
    %258 = vmatpush1.xpose.msra.mxu0 0.0
    %259 = vmatprep.subr.mxu0 0.0
    %260 = vmatpush1.xpose.msra.mxu0 0.0
    %261 = vmatprep.subr.mxu0 0.0
    %262 = vmatpush1.xpose.msra.mxu0 0.0
    %263 = vmatprep.subr.mxu0 0.0
    %264 = vmatpush1.xpose.msra.mxu0 0.0
    %265 = vmatprep.subr.mxu0 0.0
    %266 = vmatpush1.xpose.msra.mxu0 0.0
    %267 = vmatprep.subr.mxu0 0.0
    %268 = vmatpush1.xpose.msra.mxu0 0.0
    %269 = vmatprep.subr.mxu0 0.0
    %270 = vmatpush1.xpose.msra.mxu0 0.0
    %271 = vmatprep.subr.mxu0 0.0
    %272 = vmatpush1.xpose.msra.mxu0 0.0
    %273 = vmatprep.subr.mxu0 0.0
    %274 = vmatpush1.xpose.msra.mxu0 0.0
    %275 = vmatprep.subr.mxu0 0.0
    %276 = vmatpush1.xpose.msra.mxu0 0.0
    %277 = vmatprep.subr.mxu0 0.0
    %278 = vmatpush1.xpose.msra.mxu0 0.0
    %279 = vmatprep.subr.mxu0 0.0
    %280 = vmatpush1.xpose.msra.mxu0 0.0
    %281 = vmatprep.subr.mxu0 0.0
    %282 = vmatpush1.xpose.msra.mxu0 0.0
    %283 = vmatprep.subr.mxu0 0.0
    %284 = vmatpush1.xpose.msra.mxu0 0.0
    %285 = vmatprep.subr.mxu0 0.0
    %286 = vmatpush1.xpose.msra.mxu0 0.0
    %287 = vmatprep.subr.mxu0 0.0
    %288 = vmatpush1.xpose.msra.mxu0 0.0
    %289 = vmatprep.subr.mxu0 0.0
    %290 = vmatpush1.xpose.msra.mxu0 0.0
    %291 = vmatprep.subr.mxu0 0.0
    %292 = vmatpush1.xpose.msra.mxu0 0.0
    %293 = vmatprep.subr.mxu0 0.0
    %294 = vmatpush1.xpose.msra.mxu0 0.0
    %295 = vmatprep.subr.mxu0 0.0
    %296 = vmatpush1.xpose.msra.mxu0 0.0
    %297 = vmatprep.subr.mxu0 0.0
    %298 = vmatpush1.xpose.msra.mxu0 0.0
    %299 = vmatprep.subr.mxu0 0.0
    %300 = vmatpush1.xpose.msra.mxu0 0.0
    %301 = vmatprep.subr.mxu0 0.0
    %302 = vmatpush1.xpose.msra.mxu0 0.0
    %303 = vmatprep.mubr.f32.mxu0 0.0
    %304 = vmatmul.mubr.f32.gmra.mrb[0].mxu0 %v234
    %v305 = vpop.f32.mrb[0].mxu0
    %v306 = vadd.f32 0.0, %v305
    %v307 = vpop.f32.mrb[0].mxu0
    %308 = vdwg.mxu0
    %v310 = vsel %vm80, %v59, 0
    %v313 = vsel %vm80, %v67, 0
    %315 = vmatprep.subr.mxu0 0.0
    %316 = vmatpush1.xpose.msra.mxu0 %v313
    %317 = vmatprep.subr.mxu0 0.0
    %318 = vmatpush1.xpose.msra.mxu0 0.0
    %319 = vmatprep.subr.mxu0 0.0
    %320 = vmatpush1.xpose.msra.mxu0 0.0
    %321 = vmatprep.subr.mxu0 0.0
    %322 = vmatpush1.xpose.msra.mxu0 0.0
    %323 = vmatprep.subr.mxu0 0.0
    %324 = vmatpush1.xpose.msra.mxu0 0.0
    %325 = vmatprep.subr.mxu0 0.0
    %326 = vmatpush1.xpose.msra.mxu0 0.0
    %327 = vmatprep.subr.mxu0 0.0
    %328 = vmatpush1.xpose.msra.mxu0 0.0
    %329 = vmatprep.subr.mxu0 0.0
    %330 = vmatpush1.xpose.msra.mxu0 0.0
    %331 = vmatprep.subr.mxu0 0.0
    %332 = vmatpush1.xpose.msra.mxu0 0.0
    %333 = vmatprep.subr.mxu0 0.0
    %334 = vmatpush1.xpose.msra.mxu0 0.0
    %335 = vmatprep.subr.mxu0 0.0
    %336 = vmatpush1.xpose.msra.mxu0 0.0
    %337 = vmatprep.subr.mxu0 0.0
    %338 = vmatpush1.xpose.msra.mxu0 0.0
    %339 = vmatprep.subr.mxu0 0.0
    %340 = vmatpush1.xpose.msra.mxu0 0.0
    %341 = vmatprep.subr.mxu0 0.0
    %342 = vmatpush1.xpose.msra.mxu0 0.0
    %343 = vmatprep.subr.mxu0 0.0
    %344 = vmatpush1.xpose.msra.mxu0 0.0
    %345 = vmatprep.subr.mxu0 0.0
    %346 = vmatpush1.xpose.msra.mxu0 0.0
    %347 = vmatprep.subr.mxu0 0.0
    %348 = vmatpush1.xpose.msra.mxu0 0.0
    %349 = vmatprep.subr.mxu0 0.0
    %350 = vmatpush1.xpose.msra.mxu0 0.0
    %351 = vmatprep.subr.mxu0 0.0
    %352 = vmatpush1.xpose.msra.mxu0 0.0
    %353 = vmatprep.subr.mxu0 0.0
    %354 = vmatpush1.xpose.msra.mxu0 0.0
    %355 = vmatprep.subr.mxu0 0.0
    %356 = vmatpush1.xpose.msra.mxu0 0.0
    %357 = vmatprep.subr.mxu0 0.0
    %358 = vmatpush1.xpose.msra.mxu0 0.0
    %359 = vmatprep.subr.mxu0 0.0
    %360 = vmatpush1.xpose.msra.mxu0 0.0
    %361 = vmatprep.subr.mxu0 0.0
    %362 = vmatpush1.xpose.msra.mxu0 0.0
    %363 = vmatprep.subr.mxu0 0.0
    %364 = vmatpush1.xpose.msra.mxu0 0.0
    %365 = vmatprep.subr.mxu0 0.0
    %366 = vmatpush1.xpose.msra.mxu0 0.0
    %367 = vmatprep.subr.mxu0 0.0
    %368 = vmatpush1.xpose.msra.mxu0 0.0
    %369 = vmatprep.subr.mxu0 0.0
    %370 = vmatpush1.xpose.msra.mxu0 0.0
    %371 = vmatprep.subr.mxu0 0.0
    %372 = vmatpush1.xpose.msra.mxu0 0.0
    %373 = vmatprep.subr.mxu0 0.0
    %374 = vmatpush1.xpose.msra.mxu0 0.0
    %375 = vmatprep.subr.mxu0 0.0
    %376 = vmatpush1.xpose.msra.mxu0 0.0
    %377 = vmatprep.subr.mxu0 0.0
    %378 = vmatpush1.xpose.msra.mxu0 0.0
    %379 = vmatprep.mubr.f32.mxu0 0.0
    %380 = vmatmul.mubr.f32.gmra.mrb[0].mxu0 %v310
    %v381 = vpop.f32.mrb[0].mxu0
    %v382 = vadd.f32 0.0, %v381
    %v383 = vpop.f32.mrb[0].mxu0
    %384 = vdwg.mxu0
    %v386 = vsel %vm80, %v60, 0
    %v389 = vsel %vm80, %v68, 0
    %391 = vmatprep.subr.mxu0 0.0
    %392 = vmatpush1.xpose.msra.mxu0 %v389
    %393 = vmatprep.subr.mxu0 0.0
    %394 = vmatpush1.xpose.msra.mxu0 0.0
    %395 = vmatprep.subr.mxu0 0.0
    %396 = vmatpush1.xpose.msra.mxu0 0.0
    %397 = vmatprep.subr.mxu0 0.0
    %398 = vmatpush1.xpose.msra.mxu0 0.0
    %399 = vmatprep.subr.mxu0 0.0
    %400 = vmatpush1.xpose.msra.mxu0 0.0
    %401 = vmatprep.subr.mxu0 0.0
    %402 = vmatpush1.xpose.msra.mxu0 0.0
    %403 = vmatprep.subr.mxu0 0.0
    %404 = vmatpush1.xpose.msra.mxu0 0.0
    %405 = vmatprep.subr.mxu0 0.0
    %406 = vmatpush1.xpose.msra.mxu0 0.0
    %407 = vmatprep.subr.mxu0 0.0
    %408 = vmatpush1.xpose.msra.mxu0 0.0
    %409 = vmatprep.subr.mxu0 0.0
    %410 = vmatpush1.xpose.msra.mxu0 0.0
    %411 = vmatprep.subr.mxu0 0.0
    %412 = vmatpush1.xpose.msra.mxu0 0.0
    %413 = vmatprep.subr.mxu0 0.0
    %414 = vmatpush1.xpose.msra.mxu0 0.0
    %415 = vmatprep.subr.mxu0 0.0
    %416 = vmatpush1.xpose.msra.mxu0 0.0
    %417 = vmatprep.subr.mxu0 0.0
    %418 = vmatpush1.xpose.msra.mxu0 0.0
    %419 = vmatprep.subr.mxu0 0.0
    %420 = vmatpush1.xpose.msra.mxu0 0.0
    %421 = vmatprep.subr.mxu0 0.0
    %422 = vmatpush1.xpose.msra.mxu0 0.0
    %423 = vmatprep.subr.mxu0 0.0
    %424 = vmatpush1.xpose.msra.mxu0 0.0
    %425 = vmatprep.subr.mxu0 0.0
    %426 = vmatpush1.xpose.msra.mxu0 0.0
    %427 = vmatprep.subr.mxu0 0.0
    %428 = vmatpush1.xpose.msra.mxu0 0.0
    %429 = vmatprep.subr.mxu0 0.0
    %430 = vmatpush1.xpose.msra.mxu0 0.0
    %431 = vmatprep.subr.mxu0 0.0
    %432 = vmatpush1.xpose.msra.mxu0 0.0
    %433 = vmatprep.subr.mxu0 0.0
    %434 = vmatpush1.xpose.msra.mxu0 0.0
    %435 = vmatprep.subr.mxu0 0.0
    %436 = vmatpush1.xpose.msra.mxu0 0.0
    %437 = vmatprep.subr.mxu0 0.0
    %438 = vmatpush1.xpose.msra.mxu0 0.0
    %439 = vmatprep.subr.mxu0 0.0
    %440 = vmatpush1.xpose.msra.mxu0 0.0
    %441 = vmatprep.subr.mxu0 0.0
    %442 = vmatpush1.xpose.msra.mxu0 0.0
    %443 = vmatprep.subr.mxu0 0.0
    %444 = vmatpush1.xpose.msra.mxu0 0.0
    %445 = vmatprep.subr.mxu0 0.0
    %446 = vmatpush1.xpose.msra.mxu0 0.0
    %447 = vmatprep.subr.mxu0 0.0
    %448 = vmatpush1.xpose.msra.mxu0 0.0
    %449 = vmatprep.subr.mxu0 0.0
    %450 = vmatpush1.xpose.msra.mxu0 0.0
    %451 = vmatprep.subr.mxu0 0.0
    %452 = vmatpush1.xpose.msra.mxu0 0.0
    %453 = vmatprep.subr.mxu0 0.0
    %454 = vmatpush1.xpose.msra.mxu0 0.0
    %455 = vmatprep.mubr.f32.mxu0 0.0
    %456 = vmatmul.mubr.f32.gmra.mrb[0].mxu0 %v386
    %v457 = vpop.f32.mrb[0].mxu0
    %v458 = vadd.f32 0.0, %v457
    %v459 = vpop.f32.mrb[0].mxu0
    %460 = vdwg.mxu0
    %v462 = vsel %vm80, %v61, 0
    %v465 = vsel %vm80, %v69, 0
    %467 = vmatprep.subr.mxu0 0.0
    %468 = vmatpush1.xpose.msra.mxu0 %v465
    %469 = vmatprep.subr.mxu0 0.0
    %470 = vmatpush1.xpose.msra.mxu0 0.0
    %471 = vmatprep.subr.mxu0 0.0
    %472 = vmatpush1.xpose.msra.mxu0 0.0
    %473 = vmatprep.subr.mxu0 0.0
    %474 = vmatpush1.xpose.msra.mxu0 0.0
    %475 = vmatprep.subr.mxu0 0.0
    %476 = vmatpush1.xpose.msra.mxu0 0.0
    %477 = vmatprep.subr.mxu0 0.0
    %478 = vmatpush1.xpose.msra.mxu0 0.0
    %479 = vmatprep.subr.mxu0 0.0
    %480 = vmatpush1.xpose.msra.mxu0 0.0
    %481 = vmatprep.subr.mxu0 0.0
    %482 = vmatpush1.xpose.msra.mxu0 0.0
    %483 = vmatprep.subr.mxu0 0.0
    %484 = vmatpush1.xpose.msra.mxu0 0.0
    %485 = vmatprep.subr.mxu0 0.0
    %486 = vmatpush1.xpose.msra.mxu0 0.0
    %487 = vmatprep.subr.mxu0 0.0
    %488 = vmatpush1.xpose.msra.mxu0 0.0
    %489 = vmatprep.subr.mxu0 0.0
    %490 = vmatpush1.xpose.msra.mxu0 0.0
    %491 = vmatprep.subr.mxu0 0.0
    %492 = vmatpush1.xpose.msra.mxu0 0.0
    %493 = vmatprep.subr.mxu0 0.0
    %494 = vmatpush1.xpose.msra.mxu0 0.0
    %495 = vmatprep.subr.mxu0 0.0
    %496 = vmatpush1.xpose.msra.mxu0 0.0
    %497 = vmatprep.subr.mxu0 0.0
    %498 = vmatpush1.xpose.msra.mxu0 0.0
    %499 = vmatprep.subr.mxu0 0.0
    %500 = vmatpush1.xpose.msra.mxu0 0.0
    %501 = vmatprep.subr.mxu0 0.0
    %502 = vmatpush1.xpose.msra.mxu0 0.0
    %503 = vmatprep.subr.mxu0 0.0
    %504 = vmatpush1.xpose.msra.mxu0 0.0
    %505 = vmatprep.subr.mxu0 0.0
    %506 = vmatpush1.xpose.msra.mxu0 0.0
    %507 = vmatprep.subr.mxu0 0.0
    %508 = vmatpush1.xpose.msra.mxu0 0.0
    %509 = vmatprep.subr.mxu0 0.0
    %510 = vmatpush1.xpose.msra.mxu0 0.0
    %511 = vmatprep.subr.mxu0 0.0
    %512 = vmatpush1.xpose.msra.mxu0 0.0
    %513 = vmatprep.subr.mxu0 0.0
    %514 = vmatpush1.xpose.msra.mxu0 0.0
    %515 = vmatprep.subr.mxu0 0.0
    %516 = vmatpush1.xpose.msra.mxu0 0.0
    %517 = vmatprep.subr.mxu0 0.0
    %518 = vmatpush1.xpose.msra.mxu0 0.0
    %519 = vmatprep.subr.mxu0 0.0
    %520 = vmatpush1.xpose.msra.mxu0 0.0
    %521 = vmatprep.subr.mxu0 0.0
    %522 = vmatpush1.xpose.msra.mxu0 0.0
    %523 = vmatprep.subr.mxu0 0.0
    %524 = vmatpush1.xpose.msra.mxu0 0.0
    %525 = vmatprep.subr.mxu0 0.0
    %526 = vmatpush1.xpose.msra.mxu0 0.0
    %527 = vmatprep.subr.mxu0 0.0
    %528 = vmatpush1.xpose.msra.mxu0 0.0
    %529 = vmatprep.subr.mxu0 0.0
    %530 = vmatpush1.xpose.msra.mxu0 0.0
    %531 = vmatprep.mubr.f32.mxu0 0.0
    %532 = vmatmul.mubr.f32.gmra.mrb[0].mxu0 %v462
    %v533 = vpop.f32.mrb[0].mxu0
    %v534 = vadd.f32 0.0, %v533
    %v535 = vpop.f32.mrb[0].mxu0
    %536 = vdwg.mxu0
    %v538 = vsel %vm80, %v62, 0
    %v541 = vsel %vm80, %v70, 0
    %543 = vmatprep.subr.mxu0 0.0
    %544 = vmatpush1.xpose.msra.mxu0 %v541
    %545 = vmatprep.subr.mxu0 0.0
    %546 = vmatpush1.xpose.msra.mxu0 0.0
    %547 = vmatprep.subr.mxu0 0.0
    %548 = vmatpush1.xpose.msra.mxu0 0.0
    %549 = vmatprep.subr.mxu0 0.0
    %550 = vmatpush1.xpose.msra.mxu0 0.0
    %551 = vmatprep.subr.mxu0 0.0
    %552 = vmatpush1.xpose.msra.mxu0 0.0
    %553 = vmatprep.subr.mxu0 0.0
    %554 = vmatpush1.xpose.msra.mxu0 0.0
    %555 = vmatprep.subr.mxu0 0.0
    %556 = vmatpush1.xpose.msra.mxu0 0.0
    %557 = vmatprep.subr.mxu0 0.0
    %558 = vmatpush1.xpose.msra.mxu0 0.0
    %559 = vmatprep.subr.mxu0 0.0
    %560 = vmatpush1.xpose.msra.mxu0 0.0
    %561 = vmatprep.subr.mxu0 0.0
    %562 = vmatpush1.xpose.msra.mxu0 0.0
    %563 = vmatprep.subr.mxu0 0.0
    %564 = vmatpush1.xpose.msra.mxu0 0.0
    %565 = vmatprep.subr.mxu0 0.0
    %566 = vmatpush1.xpose.msra.mxu0 0.0
    %567 = vmatprep.subr.mxu0 0.0
    %568 = vmatpush1.xpose.msra.mxu0 0.0
    %569 = vmatprep.subr.mxu0 0.0
    %570 = vmatpush1.xpose.msra.mxu0 0.0
    %571 = vmatprep.subr.mxu0 0.0
    %572 = vmatpush1.xpose.msra.mxu0 0.0
    %573 = vmatprep.subr.mxu0 0.0
    %574 = vmatpush1.xpose.msra.mxu0 0.0
    %575 = vmatprep.subr.mxu0 0.0
    %576 = vmatpush1.xpose.msra.mxu0 0.0
    %577 = vmatprep.subr.mxu0 0.0
    %578 = vmatpush1.xpose.msra.mxu0 0.0
    %579 = vmatprep.subr.mxu0 0.0
    %580 = vmatpush1.xpose.msra.mxu0 0.0
    %581 = vmatprep.subr.mxu0 0.0
    %582 = vmatpush1.xpose.msra.mxu0 0.0
    %583 = vmatprep.subr.mxu0 0.0
    %584 = vmatpush1.xpose.msra.mxu0 0.0
    %585 = vmatprep.subr.mxu0 0.0
    %586 = vmatpush1.xpose.msra.mxu0 0.0
    %587 = vmatprep.subr.mxu0 0.0
    %588 = vmatpush1.xpose.msra.mxu0 0.0
    %589 = vmatprep.subr.mxu0 0.0
    %590 = vmatpush1.xpose.msra.mxu0 0.0
    %591 = vmatprep.subr.mxu0 0.0
    %592 = vmatpush1.xpose.msra.mxu0 0.0
    %593 = vmatprep.subr.mxu0 0.0
    %594 = vmatpush1.xpose.msra.mxu0 0.0
    %595 = vmatprep.subr.mxu0 0.0
    %596 = vmatpush1.xpose.msra.mxu0 0.0
    %597 = vmatprep.subr.mxu0 0.0
    %598 = vmatpush1.xpose.msra.mxu0 0.0
    %599 = vmatprep.subr.mxu0 0.0
    %600 = vmatpush1.xpose.msra.mxu0 0.0
    %601 = vmatprep.subr.mxu0 0.0
    %602 = vmatpush1.xpose.msra.mxu0 0.0
    %603 = vmatprep.subr.mxu0 0.0
    %604 = vmatpush1.xpose.msra.mxu0 0.0
    %605 = vmatprep.subr.mxu0 0.0
    %606 = vmatpush1.xpose.msra.mxu0 0.0
    %607 = vmatprep.mubr.f32.mxu0 0.0
    %608 = vmatmul.mubr.f32.gmra.mrb[0].mxu0 %v538
    %v609 = vpop.f32.mrb[0].mxu0
    %v610 = vadd.f32 0.0, %v609
    %v611 = vpop.f32.mrb[0].mxu0
    %612 = vdwg.mxu0
    %v614 = vsel %vm80, %v63, 0
    %v617 = vsel %vm80, %v71, 0
    %619 = vmatprep.subr.mxu0 0.0
    %620 = vmatpush1.xpose.msra.mxu0 %v617
    %621 = vmatprep.subr.mxu0 0.0
    %622 = vmatpush1.xpose.msra.mxu0 0.0
    %623 = vmatprep.subr.mxu0 0.0
    %624 = vmatpush1.xpose.msra.mxu0 0.0
    %625 = vmatprep.subr.mxu0 0.0
    %626 = vmatpush1.xpose.msra.mxu0 0.0
    %627 = vmatprep.subr.mxu0 0.0
    %628 = vmatpush1.xpose.msra.mxu0 0.0
    %629 = vmatprep.subr.mxu0 0.0
    %630 = vmatpush1.xpose.msra.mxu0 0.0
    %631 = vmatprep.subr.mxu0 0.0
    %632 = vmatpush1.xpose.msra.mxu0 0.0
    %633 = vmatprep.subr.mxu0 0.0
    %634 = vmatpush1.xpose.msra.mxu0 0.0
    %635 = vmatprep.subr.mxu0 0.0
    %636 = vmatpush1.xpose.msra.mxu0 0.0
    %637 = vmatprep.subr.mxu0 0.0
    %638 = vmatpush1.xpose.msra.mxu0 0.0
    %639 = vmatprep.subr.mxu0 0.0
    %640 = vmatpush1.xpose.msra.mxu0 0.0
    %641 = vmatprep.subr.mxu0 0.0
    %642 = vmatpush1.xpose.msra.mxu0 0.0
    %643 = vmatprep.subr.mxu0 0.0
    %644 = vmatpush1.xpose.msra.mxu0 0.0
    %645 = vmatprep.subr.mxu0 0.0
    %646 = vmatpush1.xpose.msra.mxu0 0.0
    %647 = vmatprep.subr.mxu0 0.0
    %648 = vmatpush1.xpose.msra.mxu0 0.0
    %649 = vmatprep.subr.mxu0 0.0
    %650 = vmatpush1.xpose.msra.mxu0 0.0
    %651 = vmatprep.subr.mxu0 0.0
    %652 = vmatpush1.xpose.msra.mxu0 0.0
    %653 = vmatprep.subr.mxu0 0.0
    %654 = vmatpush1.xpose.msra.mxu0 0.0
    %655 = vmatprep.subr.mxu0 0.0
    %656 = vmatpush1.xpose.msra.mxu0 0.0
    %657 = vmatprep.subr.mxu0 0.0
    %658 = vmatpush1.xpose.msra.mxu0 0.0
    %659 = vmatprep.subr.mxu0 0.0
    %660 = vmatpush1.xpose.msra.mxu0 0.0
    %661 = vmatprep.subr.mxu0 0.0
    %662 = vmatpush1.xpose.msra.mxu0 0.0
    %663 = vmatprep.subr.mxu0 0.0
    %664 = vmatpush1.xpose.msra.mxu0 0.0
    %665 = vmatprep.subr.mxu0 0.0
    %666 = vmatpush1.xpose.msra.mxu0 0.0
    %667 = vmatprep.subr.mxu0 0.0
    %668 = vmatpush1.xpose.msra.mxu0 0.0
    %669 = vmatprep.subr.mxu0 0.0
    %670 = vmatpush1.xpose.msra.mxu0 0.0
    %671 = vmatprep.subr.mxu0 0.0
    %672 = vmatpush1.xpose.msra.mxu0 0.0
    %673 = vmatprep.subr.mxu0 0.0
    %674 = vmatpush1.xpose.msra.mxu0 0.0
    %675 = vmatprep.subr.mxu0 0.0
    %676 = vmatpush1.xpose.msra.mxu0 0.0
    %677 = vmatprep.subr.mxu0 0.0
    %678 = vmatpush1.xpose.msra.mxu0 0.0
    %679 = vmatprep.subr.mxu0 0.0
    %680 = vmatpush1.xpose.msra.mxu0 0.0
    %681 = vmatprep.subr.mxu0 0.0
    %682 = vmatpush1.xpose.msra.mxu0 0.0
    %683 = vmatprep.mubr.f32.mxu0 0.0
    %684 = vmatmul.mubr.f32.gmra.mrb[0].mxu0 %v614
    %v685 = vpop.f32.mrb[0].mxu0
    %v686 = vadd.f32 0.0, %v685
    %v687 = vpop.f32.mrb[0].mxu0
    %688 = vdwg.mxu0
    %v689 = vmul.f32 %v154, 0.17677669
    %v690 = vmul.f32 %v230, 0.17677669
    %v691 = vmul.f32 %v306, 0.17677669
    %v692 = vmul.f32 %v382, 0.17677669
    %v693 = vmul.f32 %v458, 0.17677669
    %v694 = vmul.f32 %v534, 0.17677669
    %v695 = vmul.f32 %v610, 0.17677669
    %v696 = vmul.f32 %v686, 0.17677669
    %vm697 = vcmask 64512
    %v698 = vsel %vm697, %v689, -inf
    %699 = vmax.xlane.f32.xlu0 %v698
    %v700 = vpop.xlane.xlu0 %699
    %v701 = vsel %vm697, %v690, -inf
    %702 = vmax.xlane.f32.xlu0 %v701
    %v703 = vpop.xlane.xlu0 %702
    %v704 = vsel %vm697, %v691, -inf
    %705 = vmax.xlane.f32.xlu0 %v704
    %v706 = vpop.xlane.xlu0 %705
    %v707 = vsel %vm697, %v692, -inf
    %708 = vmax.xlane.f32.xlu0 %v707
    %v709 = vpop.xlane.xlu0 %708
    %v710 = vsel %vm697, %v693, -inf
    %711 = vmax.xlane.f32.xlu0 %v710
    %v712 = vpop.xlane.xlu0 %711
    %v713 = vsel %vm697, %v694, -inf
    %714 = vmax.xlane.f32.xlu0 %v713
    %v715 = vpop.xlane.xlu0 %714
    %v716 = vsel %vm697, %v695, -inf
    %717 = vmax.xlane.f32.xlu0 %v716
    %v718 = vpop.xlane.xlu0 %717
    %v719 = vsel %vm697, %v696, -inf
    %720 = vmax.xlane.f32.xlu0 %v719
    %v721 = vpop.xlane.xlu0 %720
    %v722 = vsub.f32 %v689, %v700
    %v723 = vsub.f32 %v690, %v703
    %v724 = vsub.f32 %v691, %v706
    %v725 = vsub.f32 %v692, %v709
    %v726 = vsub.f32 %v693, %v712
    %v727 = vsub.f32 %v694, %v715
    %v728 = vsub.f32 %v695, %v718
    %v729 = vsub.f32 %v696, %v721
    %v730 = vmul.f32 %v722, 1.442695
    %v731 = vpow.pop %v730
    %v732 = vmul.f32 %v723, 1.442695
    %v733 = vpow.pop %v732
    %v734 = vmul.f32 %v724, 1.442695
    %v735 = vpow.pop %v734
    %v736 = vmul.f32 %v725, 1.442695
    %v737 = vpow.pop %v736
    %v738 = vmul.f32 %v726, 1.442695
    %v739 = vpow.pop %v738
    %v740 = vmul.f32 %v727, 1.442695
    %v741 = vpow.pop %v740
    %v742 = vmul.f32 %v728, 1.442695
    %v743 = vpow.pop %v742
    %v744 = vmul.f32 %v729, 1.442695
    %v745 = vpow.pop %v744
    %v746 = vsel %vm697, %v731, 0.0
    %747 = vadd.xlane.f32.xlu0 %v746
    %v748 = vpop.xlane.xlu0 %747
    %v749 = vsel %vm697, %v733, 0.0
    %750 = vadd.xlane.f32.xlu0 %v749
    %v751 = vpop.xlane.xlu0 %750
    %v752 = vsel %vm697, %v735, 0.0
    %753 = vadd.xlane.f32.xlu0 %v752
    %v754 = vpop.xlane.xlu0 %753
    %v755 = vsel %vm697, %v737, 0.0
    %756 = vadd.xlane.f32.xlu0 %v755
    %v757 = vpop.xlane.xlu0 %756
    %v758 = vsel %vm697, %v739, 0.0
    %759 = vadd.xlane.f32.xlu0 %v758
    %v760 = vpop.xlane.xlu0 %759
    %v761 = vsel %vm697, %v741, 0.0
    %762 = vadd.xlane.f32.xlu0 %v761
    %v763 = vpop.xlane.xlu0 %762
    %v764 = vsel %vm697, %v743, 0.0
    %765 = vadd.xlane.f32.xlu0 %v764
    %v766 = vpop.xlane.xlu0 %765
    %v767 = vsel %vm697, %v745, 0.0
    %768 = vadd.xlane.f32.xlu0 %v767
    %v769 = vpop.xlane.xlu0 %768
    %v770 = vrcp.pop %v748
    %v771 = vrcp.pop %v751
    %v772 = vrcp.pop %v754
    %v773 = vrcp.pop %v757
    %v774 = vrcp.pop %v760
    %v775 = vrcp.pop %v763
    %v776 = vrcp.pop %v766
    %v777 = vrcp.pop %v769
    %v778 = vmul.f32 %v748, %v770
    %v779 = vmul.f32 %v751, %v771
    %v780 = vmul.f32 %v754, %v772
    %v781 = vmul.f32 %v757, %v773
    %v782 = vmul.f32 %v760, %v774
    %v783 = vmul.f32 %v763, %v775
    %v784 = vmul.f32 %v766, %v776
    %v785 = vmul.f32 %v769, %v777
    %v786 = vsub.f32 2.0, %v778
    %v787 = vsub.f32 2.0, %v779
    %v788 = vsub.f32 2.0, %v780
    %v789 = vsub.f32 2.0, %v781
    %v790 = vsub.f32 2.0, %v782
    %v791 = vsub.f32 2.0, %v783
    %v792 = vsub.f32 2.0, %v784
    %v793 = vsub.f32 2.0, %v785
    %v794 = vmul.f32 %v770, %v786
    %v795 = vmul.f32 %v771, %v787
    %v796 = vmul.f32 %v772, %v788
    %v797 = vmul.f32 %v773, %v789
    %v798 = vmul.f32 %v774, %v790
    %v799 = vmul.f32 %v775, %v791
    %v800 = vmul.f32 %v776, %v792
    %v801 = vmul.f32 %v777, %v793
    %v802 = vmul.f32 %v731, %v794
    %v803 = vmul.f32 %v733, %v795
    %v804 = vmul.f32 %v735, %v796
    %v805 = vmul.f32 %v737, %v797
    %v806 = vmul.f32 %v739, %v798
    %v807 = vmul.f32 %v741, %v799
    %v808 = vmul.f32 %v743, %v800
    %v809 = vmul.f32 %v745, %v801
    %v811 = vsel %vm697, %v802, 0
    %813 = vmatprep.subr.mxu0 0.0
    %814 = vmatpush1.msra.mxu0 %v72
    %815 = vmatprep.subr.mxu0 0.0
    %816 = vmatpush1.msra.mxu0 0.0
    %817 = vmatprep.subr.mxu0 0.0
    %818 = vmatpush1.msra.mxu0 0.0
    %819 = vmatprep.subr.mxu0 0.0
    %820 = vmatpush1.msra.mxu0 0.0
    %821 = vmatprep.subr.mxu0 0.0
    %822 = vmatpush1.msra.mxu0 0.0
    %823 = vmatprep.subr.mxu0 0.0
    %824 = vmatpush1.msra.mxu0 0.0
    %825 = vmatprep.subr.mxu0 0.0
    %826 = vmatpush1.msra.mxu0 0.0
    %827 = vmatprep.subr.mxu0 0.0
    %828 = vmatpush1.msra.mxu0 0.0
    %829 = vmatprep.subr.mxu0 0.0
    %830 = vmatpush1.msra.mxu0 0.0
    %831 = vmatprep.subr.mxu0 0.0
    %832 = vmatpush1.msra.mxu0 0.0
    %833 = vmatprep.subr.mxu0 0.0
    %834 = vmatpush1.msra.mxu0 0.0
    %835 = vmatprep.subr.mxu0 0.0
    %836 = vmatpush1.msra.mxu0 0.0
    %837 = vmatprep.subr.mxu0 0.0
    %838 = vmatpush1.msra.mxu0 0.0
    %839 = vmatprep.subr.mxu0 0.0
    %840 = vmatpush1.msra.mxu0 0.0
    %841 = vmatprep.subr.mxu0 0.0
    %842 = vmatpush1.msra.mxu0 0.0
    %843 = vmatprep.subr.mxu0 0.0
    %844 = vmatpush1.msra.mxu0 0.0
    %845 = vmatprep.subr.mxu0 0.0
    %846 = vmatpush1.msra.mxu0 0.0
    %847 = vmatprep.subr.mxu0 0.0
    %848 = vmatpush1.msra.mxu0 0.0
    %849 = vmatprep.subr.mxu0 0.0
    %850 = vmatpush1.msra.mxu0 0.0
    %851 = vmatprep.subr.mxu0 0.0
    %852 = vmatpush1.msra.mxu0 0.0
    %853 = vmatprep.subr.mxu0 0.0
    %854 = vmatpush1.msra.mxu0 0.0
    %855 = vmatprep.subr.mxu0 0.0
    %856 = vmatpush1.msra.mxu0 0.0
    %857 = vmatprep.subr.mxu0 0.0
    %858 = vmatpush1.msra.mxu0 0.0
    %859 = vmatprep.subr.mxu0 0.0
    %860 = vmatpush1.msra.mxu0 0.0
    %861 = vmatprep.subr.mxu0 0.0
    %862 = vmatpush1.msra.mxu0 0.0
    %863 = vmatprep.subr.mxu0 0.0
    %864 = vmatpush1.msra.mxu0 0.0
    %865 = vmatprep.subr.mxu0 0.0
    %866 = vmatpush1.msra.mxu0 0.0
    %867 = vmatprep.subr.mxu0 0.0
    %868 = vmatpush1.msra.mxu0 0.0
    %869 = vmatprep.subr.mxu0 0.0
    %870 = vmatpush1.msra.mxu0 0.0
    %871 = vmatprep.subr.mxu0 0.0
    %872 = vmatpush1.msra.mxu0 0.0
    %873 = vmatprep.subr.mxu0 0.0
    %874 = vmatpush1.msra.mxu0 0.0
    %875 = vmatprep.subr.mxu0 0.0
    %876 = vmatpush1.msra.mxu0 0.0
    %877 = vmatprep.mubr.f32.mxu0 0.0
    %878 = vmatmul.mubr.f32.gmra.mrb[0].mxu0 %v811
    %v879 = vpop.f32.mrb[0].mxu0
    %v880 = vadd.f32 0.0, %v879
    %v881 = vpop.f32.mrb[0].mxu0
    %882 = vdwg.mxu0
    %v884 = vsel %vm697, %v803, 0
    %886 = vmatprep.subr.mxu0 0.0
    %887 = vmatpush1.msra.mxu0 %v73
    %888 = vmatprep.subr.mxu0 0.0
    %889 = vmatpush1.msra.mxu0 0.0
    %890 = vmatprep.subr.mxu0 0.0
    %891 = vmatpush1.msra.mxu0 0.0
    %892 = vmatprep.subr.mxu0 0.0
    %893 = vmatpush1.msra.mxu0 0.0
    %894 = vmatprep.subr.mxu0 0.0
    %895 = vmatpush1.msra.mxu0 0.0
    %896 = vmatprep.subr.mxu0 0.0
    %897 = vmatpush1.msra.mxu0 0.0
    %898 = vmatprep.subr.mxu0 0.0
    %899 = vmatpush1.msra.mxu0 0.0
    %900 = vmatprep.subr.mxu0 0.0
    %901 = vmatpush1.msra.mxu0 0.0
    %902 = vmatprep.subr.mxu0 0.0
    %903 = vmatpush1.msra.mxu0 0.0
    %904 = vmatprep.subr.mxu0 0.0
    %905 = vmatpush1.msra.mxu0 0.0
    %906 = vmatprep.subr.mxu0 0.0
    %907 = vmatpush1.msra.mxu0 0.0
    %908 = vmatprep.subr.mxu0 0.0
    %909 = vmatpush1.msra.mxu0 0.0
    %910 = vmatprep.subr.mxu0 0.0
    %911 = vmatpush1.msra.mxu0 0.0
    %912 = vmatprep.subr.mxu0 0.0
    %913 = vmatpush1.msra.mxu0 0.0
    %914 = vmatprep.subr.mxu0 0.0
    %915 = vmatpush1.msra.mxu0 0.0
    %916 = vmatprep.subr.mxu0 0.0
    %917 = vmatpush1.msra.mxu0 0.0
    %918 = vmatprep.subr.mxu0 0.0
    %919 = vmatpush1.msra.mxu0 0.0
    %920 = vmatprep.subr.mxu0 0.0
    %921 = vmatpush1.msra.mxu0 0.0
    %922 = vmatprep.subr.mxu0 0.0
    %923 = vmatpush1.msra.mxu0 0.0
    %924 = vmatprep.subr.mxu0 0.0
    %925 = vmatpush1.msra.mxu0 0.0
    %926 = vmatprep.subr.mxu0 0.0
    %927 = vmatpush1.msra.mxu0 0.0
    %928 = vmatprep.subr.mxu0 0.0
    %929 = vmatpush1.msra.mxu0 0.0
    %930 = vmatprep.subr.mxu0 0.0
    %931 = vmatpush1.msra.mxu0 0.0
    %932 = vmatprep.subr.mxu0 0.0
    %933 = vmatpush1.msra.mxu0 0.0
    %934 = vmatprep.subr.mxu0 0.0
    %935 = vmatpush1.msra.mxu0 0.0
    %936 = vmatprep.subr.mxu0 0.0
    %937 = vmatpush1.msra.mxu0 0.0
    %938 = vmatprep.subr.mxu0 0.0
    %939 = vmatpush1.msra.mxu0 0.0
    %940 = vmatprep.subr.mxu0 0.0
    %941 = vmatpush1.msra.mxu0 0.0
    %942 = vmatprep.subr.mxu0 0.0
    %943 = vmatpush1.msra.mxu0 0.0
    %944 = vmatprep.subr.mxu0 0.0
    %945 = vmatpush1.msra.mxu0 0.0
    %946 = vmatprep.subr.mxu0 0.0
    %947 = vmatpush1.msra.mxu0 0.0
    %948 = vmatprep.subr.mxu0 0.0
    %949 = vmatpush1.msra.mxu0 0.0
    %950 = vmatprep.mubr.f32.mxu0 0.0
    %951 = vmatmul.mubr.f32.gmra.mrb[0].mxu0 %v884
    %v952 = vpop.f32.mrb[0].mxu0
    %v953 = vadd.f32 0.0, %v952
    %v954 = vpop.f32.mrb[0].mxu0
    %955 = vdwg.mxu0
    %v957 = vsel %vm697, %v804, 0
    %959 = vmatprep.subr.mxu0 0.0
    %960 = vmatpush1.msra.mxu0 %v74
    %961 = vmatprep.subr.mxu0 0.0
    %962 = vmatpush1.msra.mxu0 0.0
    %963 = vmatprep.subr.mxu0 0.0
    %964 = vmatpush1.msra.mxu0 0.0
    %965 = vmatprep.subr.mxu0 0.0
    %966 = vmatpush1.msra.mxu0 0.0
    %967 = vmatprep.subr.mxu0 0.0
    %968 = vmatpush1.msra.mxu0 0.0
    %969 = vmatprep.subr.mxu0 0.0
    %970 = vmatpush1.msra.mxu0 0.0
    %971 = vmatprep.subr.mxu0 0.0
    %972 = vmatpush1.msra.mxu0 0.0
    %973 = vmatprep.subr.mxu0 0.0
    %974 = vmatpush1.msra.mxu0 0.0
    %975 = vmatprep.subr.mxu0 0.0
    %976 = vmatpush1.msra.mxu0 0.0
    %977 = vmatprep.subr.mxu0 0.0
    %978 = vmatpush1.msra.mxu0 0.0
    %979 = vmatprep.subr.mxu0 0.0
    %980 = vmatpush1.msra.mxu0 0.0
    %981 = vmatprep.subr.mxu0 0.0
    %982 = vmatpush1.msra.mxu0 0.0
    %983 = vmatprep.subr.mxu0 0.0
    %984 = vmatpush1.msra.mxu0 0.0
    %985 = vmatprep.subr.mxu0 0.0
    %986 = vmatpush1.msra.mxu0 0.0
    %987 = vmatprep.subr.mxu0 0.0
    %988 = vmatpush1.msra.mxu0 0.0
    %989 = vmatprep.subr.mxu0 0.0
    %990 = vmatpush1.msra.mxu0 0.0
    %991 = vmatprep.subr.mxu0 0.0
    %992 = vmatpush1.msra.mxu0 0.0
    %993 = vmatprep.subr.mxu0 0.0
    %994 = vmatpush1.msra.mxu0 0.0
    %995 = vmatprep.subr.mxu0 0.0
    %996 = vmatpush1.msra.mxu0 0.0
    %997 = vmatprep.subr.mxu0 0.0
    %998 = vmatpush1.msra.mxu0 0.0
    %999 = vmatprep.subr.mxu0 0.0
    %1000 = vmatpush1.msra.mxu0 0.0
    %1001 = vmatprep.subr.mxu0 0.0
    %1002 = vmatpush1.msra.mxu0 0.0
    %1003 = vmatprep.subr.mxu0 0.0
    %1004 = vmatpush1.msra.mxu0 0.0
    %1005 = vmatprep.subr.mxu0 0.0
    %1006 = vmatpush1.msra.mxu0 0.0
    %1007 = vmatprep.subr.mxu0 0.0
    %1008 = vmatpush1.msra.mxu0 0.0
    %1009 = vmatprep.subr.mxu0 0.0
    %1010 = vmatpush1.msra.mxu0 0.0
    %1011 = vmatprep.subr.mxu0 0.0
    %1012 = vmatpush1.msra.mxu0 0.0
    %1013 = vmatprep.subr.mxu0 0.0
    %1014 = vmatpush1.msra.mxu0 0.0
    %1015 = vmatprep.subr.mxu0 0.0
    %1016 = vmatpush1.msra.mxu0 0.0
    %1017 = vmatprep.subr.mxu0 0.0
    %1018 = vmatpush1.msra.mxu0 0.0
    %1019 = vmatprep.subr.mxu0 0.0
    %1020 = vmatpush1.msra.mxu0 0.0
    %1021 = vmatprep.subr.mxu0 0.0
    %1022 = vmatpush1.msra.mxu0 0.0
    %1023 = vmatprep.mubr.f32.mxu0 0.0
    %1024 = vmatmul.mubr.f32.gmra.mrb[0].mxu0 %v957
    %v1025 = vpop.f32.mrb[0].mxu0
    %v1026 = vadd.f32 0.0, %v1025
    %v1027 = vpop.f32.mrb[0].mxu0
    %1028 = vdwg.mxu0
    %v1030 = vsel %vm697, %v805, 0
    %1032 = vmatprep.subr.mxu0 0.0
    %1033 = vmatpush1.msra.mxu0 %v75
    %1034 = vmatprep.subr.mxu0 0.0
    %1035 = vmatpush1.msra.mxu0 0.0
    %1036 = vmatprep.subr.mxu0 0.0
    %1037 = vmatpush1.msra.mxu0 0.0
    %1038 = vmatprep.subr.mxu0 0.0
    %1039 = vmatpush1.msra.mxu0 0.0
    %1040 = vmatprep.subr.mxu0 0.0
    %1041 = vmatpush1.msra.mxu0 0.0
    %1042 = vmatprep.subr.mxu0 0.0
    %1043 = vmatpush1.msra.mxu0 0.0
    %1044 = vmatprep.subr.mxu0 0.0
    %1045 = vmatpush1.msra.mxu0 0.0
    %1046 = vmatprep.subr.mxu0 0.0
    %1047 = vmatpush1.msra.mxu0 0.0
    %1048 = vmatprep.subr.mxu0 0.0
    %1049 = vmatpush1.msra.mxu0 0.0
    %1050 = vmatprep.subr.mxu0 0.0
    %1051 = vmatpush1.msra.mxu0 0.0
    %1052 = vmatprep.subr.mxu0 0.0
    %1053 = vmatpush1.msra.mxu0 0.0
    %1054 = vmatprep.subr.mxu0 0.0
    %1055 = vmatpush1.msra.mxu0 0.0
    %1056 = vmatprep.subr.mxu0 0.0
    %1057 = vmatpush1.msra.mxu0 0.0
    %1058 = vmatprep.subr.mxu0 0.0
    %1059 = vmatpush1.msra.mxu0 0.0
    %1060 = vmatprep.subr.mxu0 0.0
    %1061 = vmatpush1.msra.mxu0 0.0
    %1062 = vmatprep.subr.mxu0 0.0
    %1063 = vmatpush1.msra.mxu0 0.0
    %1064 = vmatprep.subr.mxu0 0.0
    %1065 = vmatpush1.msra.mxu0 0.0
    %1066 = vmatprep.subr.mxu0 0.0
    %1067 = vmatpush1.msra.mxu0 0.0
    %1068 = vmatprep.subr.mxu0 0.0
    %1069 = vmatpush1.msra.mxu0 0.0
    %1070 = vmatprep.subr.mxu0 0.0
    %1071 = vmatpush1.msra.mxu0 0.0
    %1072 = vmatprep.subr.mxu0 0.0
    %1073 = vmatpush1.msra.mxu0 0.0
    %1074 = vmatprep.subr.mxu0 0.0
    %1075 = vmatpush1.msra.mxu0 0.0
    %1076 = vmatprep.subr.mxu0 0.0
    %1077 = vmatpush1.msra.mxu0 0.0
    %1078 = vmatprep.subr.mxu0 0.0
    %1079 = vmatpush1.msra.mxu0 0.0
    %1080 = vmatprep.subr.mxu0 0.0
    %1081 = vmatpush1.msra.mxu0 0.0
    %1082 = vmatprep.subr.mxu0 0.0
    %1083 = vmatpush1.msra.mxu0 0.0
    %1084 = vmatprep.subr.mxu0 0.0
    %1085 = vmatpush1.msra.mxu0 0.0
    %1086 = vmatprep.subr.mxu0 0.0
    %1087 = vmatpush1.msra.mxu0 0.0
    %1088 = vmatprep.subr.mxu0 0.0
    %1089 = vmatpush1.msra.mxu0 0.0
    %1090 = vmatprep.subr.mxu0 0.0
    %1091 = vmatpush1.msra.mxu0 0.0
    %1092 = vmatprep.subr.mxu0 0.0
    %1093 = vmatpush1.msra.mxu0 0.0
    %1094 = vmatprep.subr.mxu0 0.0
    %1095 = vmatpush1.msra.mxu0 0.0
    %1096 = vmatprep.mubr.f32.mxu0 0.0
    %1097 = vmatmul.mubr.f32.gmra.mrb[0].mxu0 %v1030
    %v1098 = vpop.f32.mrb[0].mxu0
    %v1099 = vadd.f32 0.0, %v1098
    %v1100 = vpop.f32.mrb[0].mxu0
    %1101 = vdwg.mxu0
    %v1103 = vsel %vm697, %v806, 0
    %1105 = vmatprep.subr.mxu0 0.0
    %1106 = vmatpush1.msra.mxu0 %v76
    %1107 = vmatprep.subr.mxu0 0.0
    %1108 = vmatpush1.msra.mxu0 0.0
    %1109 = vmatprep.subr.mxu0 0.0
    %1110 = vmatpush1.msra.mxu0 0.0
    %1111 = vmatprep.subr.mxu0 0.0
    %1112 = vmatpush1.msra.mxu0 0.0
    %1113 = vmatprep.subr.mxu0 0.0
    %1114 = vmatpush1.msra.mxu0 0.0
    %1115 = vmatprep.subr.mxu0 0.0
    %1116 = vmatpush1.msra.mxu0 0.0
    %1117 = vmatprep.subr.mxu0 0.0
    %1118 = vmatpush1.msra.mxu0 0.0
    %1119 = vmatprep.subr.mxu0 0.0
    %1120 = vmatpush1.msra.mxu0 0.0
    %1121 = vmatprep.subr.mxu0 0.0
    %1122 = vmatpush1.msra.mxu0 0.0
    %1123 = vmatprep.subr.mxu0 0.0
    %1124 = vmatpush1.msra.mxu0 0.0
    %1125 = vmatprep.subr.mxu0 0.0
    %1126 = vmatpush1.msra.mxu0 0.0
    %1127 = vmatprep.subr.mxu0 0.0
    %1128 = vmatpush1.msra.mxu0 0.0
    %1129 = vmatprep.subr.mxu0 0.0
    %1130 = vmatpush1.msra.mxu0 0.0
    %1131 = vmatprep.subr.mxu0 0.0
    %1132 = vmatpush1.msra.mxu0 0.0
    %1133 = vmatprep.subr.mxu0 0.0
    %1134 = vmatpush1.msra.mxu0 0.0
    %1135 = vmatprep.subr.mxu0 0.0
    %1136 = vmatpush1.msra.mxu0 0.0
    %1137 = vmatprep.subr.mxu0 0.0
    %1138 = vmatpush1.msra.mxu0 0.0
    %1139 = vmatprep.subr.mxu0 0.0
    %1140 = vmatpush1.msra.mxu0 0.0
    %1141 = vmatprep.subr.mxu0 0.0
    %1142 = vmatpush1.msra.mxu0 0.0
    %1143 = vmatprep.subr.mxu0 0.0
    %1144 = vmatpush1.msra.mxu0 0.0
    %1145 = vmatprep.subr.mxu0 0.0
    %1146 = vmatpush1.msra.mxu0 0.0
    %1147 = vmatprep.subr.mxu0 0.0
    %1148 = vmatpush1.msra.mxu0 0.0
    %1149 = vmatprep.subr.mxu0 0.0
    %1150 = vmatpush1.msra.mxu0 0.0
    %1151 = vmatprep.subr.mxu0 0.0
    %1152 = vmatpush1.msra.mxu0 0.0
    %1153 = vmatprep.subr.mxu0 0.0
    %1154 = vmatpush1.msra.mxu0 0.0
    %1155 = vmatprep.subr.mxu0 0.0
    %1156 = vmatpush1.msra.mxu0 0.0
    %1157 = vmatprep.subr.mxu0 0.0
    %1158 = vmatpush1.msra.mxu0 0.0
    %1159 = vmatprep.subr.mxu0 0.0
    %1160 = vmatpush1.msra.mxu0 0.0
    %1161 = vmatprep.subr.mxu0 0.0
    %1162 = vmatpush1.msra.mxu0 0.0
    %1163 = vmatprep.subr.mxu0 0.0
    %1164 = vmatpush1.msra.mxu0 0.0
    %1165 = vmatprep.subr.mxu0 0.0
    %1166 = vmatpush1.msra.mxu0 0.0
    %1167 = vmatprep.subr.mxu0 0.0
    %1168 = vmatpush1.msra.mxu0 0.0
    %1169 = vmatprep.mubr.f32.mxu0 0.0
    %1170 = vmatmul.mubr.f32.gmra.mrb[0].mxu0 %v1103
    %v1171 = vpop.f32.mrb[0].mxu0
    %v1172 = vadd.f32 0.0, %v1171
    %v1173 = vpop.f32.mrb[0].mxu0
    %1174 = vdwg.mxu0
    %v1176 = vsel %vm697, %v807, 0
    %1178 = vmatprep.subr.mxu0 0.0
    %1179 = vmatpush1.msra.mxu0 %v77
    %1180 = vmatprep.subr.mxu0 0.0
    %1181 = vmatpush1.msra.mxu0 0.0
    %1182 = vmatprep.subr.mxu0 0.0
    %1183 = vmatpush1.msra.mxu0 0.0
    %1184 = vmatprep.subr.mxu0 0.0
    %1185 = vmatpush1.msra.mxu0 0.0
    %1186 = vmatprep.subr.mxu0 0.0
    %1187 = vmatpush1.msra.mxu0 0.0
    %1188 = vmatprep.subr.mxu0 0.0
    %1189 = vmatpush1.msra.mxu0 0.0
    %1190 = vmatprep.subr.mxu0 0.0
    %1191 = vmatpush1.msra.mxu0 0.0
    %1192 = vmatprep.subr.mxu0 0.0
    %1193 = vmatpush1.msra.mxu0 0.0
    %1194 = vmatprep.subr.mxu0 0.0
    %1195 = vmatpush1.msra.mxu0 0.0
    %1196 = vmatprep.subr.mxu0 0.0
    %1197 = vmatpush1.msra.mxu0 0.0
    %1198 = vmatprep.subr.mxu0 0.0
    %1199 = vmatpush1.msra.mxu0 0.0
    %1200 = vmatprep.subr.mxu0 0.0
    %1201 = vmatpush1.msra.mxu0 0.0
    %1202 = vmatprep.subr.mxu0 0.0
    %1203 = vmatpush1.msra.mxu0 0.0
    %1204 = vmatprep.subr.mxu0 0.0
    %1205 = vmatpush1.msra.mxu0 0.0
    %1206 = vmatprep.subr.mxu0 0.0
    %1207 = vmatpush1.msra.mxu0 0.0
    %1208 = vmatprep.subr.mxu0 0.0
    %1209 = vmatpush1.msra.mxu0 0.0
    %1210 = vmatprep.subr.mxu0 0.0
    %1211 = vmatpush1.msra.mxu0 0.0
    %1212 = vmatprep.subr.mxu0 0.0
    %1213 = vmatpush1.msra.mxu0 0.0
    %1214 = vmatprep.subr.mxu0 0.0
    %1215 = vmatpush1.msra.mxu0 0.0
    %1216 = vmatprep.subr.mxu0 0.0
    %1217 = vmatpush1.msra.mxu0 0.0
    %1218 = vmatprep.subr.mxu0 0.0
    %1219 = vmatpush1.msra.mxu0 0.0
    %1220 = vmatprep.subr.mxu0 0.0
    %1221 = vmatpush1.msra.mxu0 0.0
    %1222 = vmatprep.subr.mxu0 0.0
    %1223 = vmatpush1.msra.mxu0 0.0
    %1224 = vmatprep.subr.mxu0 0.0
    %1225 = vmatpush1.msra.mxu0 0.0
    %1226 = vmatprep.subr.mxu0 0.0
    %1227 = vmatpush1.msra.mxu0 0.0
    %1228 = vmatprep.subr.mxu0 0.0
    %1229 = vmatpush1.msra.mxu0 0.0
    %1230 = vmatprep.subr.mxu0 0.0
    %1231 = vmatpush1.msra.mxu0 0.0
    %1232 = vmatprep.subr.mxu0 0.0
    %1233 = vmatpush1.msra.mxu0 0.0
    %1234 = vmatprep.subr.mxu0 0.0
    %1235 = vmatpush1.msra.mxu0 0.0
    %1236 = vmatprep.subr.mxu0 0.0
    %1237 = vmatpush1.msra.mxu0 0.0
    %1238 = vmatprep.subr.mxu0 0.0
    %1239 = vmatpush1.msra.mxu0 0.0
    %1240 = vmatprep.subr.mxu0 0.0
    %1241 = vmatpush1.msra.mxu0 0.0
    %1242 = vmatprep.mubr.f32.mxu0 0.0
    %1243 = vmatmul.mubr.f32.gmra.mrb[0].mxu0 %v1176
    %v1244 = vpop.f32.mrb[0].mxu0
    %v1245 = vadd.f32 0.0, %v1244
    %v1246 = vpop.f32.mrb[0].mxu0
    %1247 = vdwg.mxu0
    %v1249 = vsel %vm697, %v808, 0
    %1251 = vmatprep.subr.mxu0 0.0
    %1252 = vmatpush1.msra.mxu0 %v78
    %1253 = vmatprep.subr.mxu0 0.0
    %1254 = vmatpush1.msra.mxu0 0.0
    %1255 = vmatprep.subr.mxu0 0.0
    %1256 = vmatpush1.msra.mxu0 0.0
    %1257 = vmatprep.subr.mxu0 0.0
    %1258 = vmatpush1.msra.mxu0 0.0
    %1259 = vmatprep.subr.mxu0 0.0
    %1260 = vmatpush1.msra.mxu0 0.0
    %1261 = vmatprep.subr.mxu0 0.0
    %1262 = vmatpush1.msra.mxu0 0.0
    %1263 = vmatprep.subr.mxu0 0.0
    %1264 = vmatpush1.msra.mxu0 0.0
    %1265 = vmatprep.subr.mxu0 0.0
    %1266 = vmatpush1.msra.mxu0 0.0
    %1267 = vmatprep.subr.mxu0 0.0
    %1268 = vmatpush1.msra.mxu0 0.0
    %1269 = vmatprep.subr.mxu0 0.0
    %1270 = vmatpush1.msra.mxu0 0.0
    %1271 = vmatprep.subr.mxu0 0.0
    %1272 = vmatpush1.msra.mxu0 0.0
    %1273 = vmatprep.subr.mxu0 0.0
    %1274 = vmatpush1.msra.mxu0 0.0
    %1275 = vmatprep.subr.mxu0 0.0
    %1276 = vmatpush1.msra.mxu0 0.0
    %1277 = vmatprep.subr.mxu0 0.0
    %1278 = vmatpush1.msra.mxu0 0.0
    %1279 = vmatprep.subr.mxu0 0.0
    %1280 = vmatpush1.msra.mxu0 0.0
    %1281 = vmatprep.subr.mxu0 0.0
    %1282 = vmatpush1.msra.mxu0 0.0
    %1283 = vmatprep.subr.mxu0 0.0
    %1284 = vmatpush1.msra.mxu0 0.0
    %1285 = vmatprep.subr.mxu0 0.0
    %1286 = vmatpush1.msra.mxu0 0.0
    %1287 = vmatprep.subr.mxu0 0.0
    %1288 = vmatpush1.msra.mxu0 0.0
    %1289 = vmatprep.subr.mxu0 0.0
    %1290 = vmatpush1.msra.mxu0 0.0
    %1291 = vmatprep.subr.mxu0 0.0
    %1292 = vmatpush1.msra.mxu0 0.0
    %1293 = vmatprep.subr.mxu0 0.0
    %1294 = vmatpush1.msra.mxu0 0.0
    %1295 = vmatprep.subr.mxu0 0.0
    %1296 = vmatpush1.msra.mxu0 0.0
    %1297 = vmatprep.subr.mxu0 0.0
    %1298 = vmatpush1.msra.mxu0 0.0
    %1299 = vmatprep.subr.mxu0 0.0
    %1300 = vmatpush1.msra.mxu0 0.0
    %1301 = vmatprep.subr.mxu0 0.0
    %1302 = vmatpush1.msra.mxu0 0.0
    %1303 = vmatprep.subr.mxu0 0.0
    %1304 = vmatpush1.msra.mxu0 0.0
    %1305 = vmatprep.subr.mxu0 0.0
    %1306 = vmatpush1.msra.mxu0 0.0
    %1307 = vmatprep.subr.mxu0 0.0
    %1308 = vmatpush1.msra.mxu0 0.0
    %1309 = vmatprep.subr.mxu0 0.0
    %1310 = vmatpush1.msra.mxu0 0.0
    %1311 = vmatprep.subr.mxu0 0.0
    %1312 = vmatpush1.msra.mxu0 0.0
    %1313 = vmatprep.subr.mxu0 0.0
    %1314 = vmatpush1.msra.mxu0 0.0
    %1315 = vmatprep.mubr.f32.mxu0 0.0
    %1316 = vmatmul.mubr.f32.gmra.mrb[0].mxu0 %v1249
    %v1317 = vpop.f32.mrb[0].mxu0
    %v1318 = vadd.f32 0.0, %v1317
    %v1319 = vpop.f32.mrb[0].mxu0
    %1320 = vdwg.mxu0
    %v1322 = vsel %vm697, %v809, 0
    %1324 = vmatprep.subr.mxu0 0.0
    %1325 = vmatpush1.msra.mxu0 %v79
    %1326 = vmatprep.subr.mxu0 0.0
    %1327 = vmatpush1.msra.mxu0 0.0
    %1328 = vmatprep.subr.mxu0 0.0
    %1329 = vmatpush1.msra.mxu0 0.0
    %1330 = vmatprep.subr.mxu0 0.0
    %1331 = vmatpush1.msra.mxu0 0.0
    %1332 = vmatprep.subr.mxu0 0.0
    %1333 = vmatpush1.msra.mxu0 0.0
    %1334 = vmatprep.subr.mxu0 0.0
    %1335 = vmatpush1.msra.mxu0 0.0
    %1336 = vmatprep.subr.mxu0 0.0
    %1337 = vmatpush1.msra.mxu0 0.0
    %1338 = vmatprep.subr.mxu0 0.0
    %1339 = vmatpush1.msra.mxu0 0.0
    %1340 = vmatprep.subr.mxu0 0.0
    %1341 = vmatpush1.msra.mxu0 0.0
    %1342 = vmatprep.subr.mxu0 0.0
    %1343 = vmatpush1.msra.mxu0 0.0
    %1344 = vmatprep.subr.mxu0 0.0
    %1345 = vmatpush1.msra.mxu0 0.0
    %1346 = vmatprep.subr.mxu0 0.0
    %1347 = vmatpush1.msra.mxu0 0.0
    %1348 = vmatprep.subr.mxu0 0.0
    %1349 = vmatpush1.msra.mxu0 0.0
    %1350 = vmatprep.subr.mxu0 0.0
    %1351 = vmatpush1.msra.mxu0 0.0
    %1352 = vmatprep.subr.mxu0 0.0
    %1353 = vmatpush1.msra.mxu0 0.0
    %1354 = vmatprep.subr.mxu0 0.0
    %1355 = vmatpush1.msra.mxu0 0.0
    %1356 = vmatprep.subr.mxu0 0.0
    %1357 = vmatpush1.msra.mxu0 0.0
    %1358 = vmatprep.subr.mxu0 0.0
    %1359 = vmatpush1.msra.mxu0 0.0
    %1360 = vmatprep.subr.mxu0 0.0
    %1361 = vmatpush1.msra.mxu0 0.0
    %1362 = vmatprep.subr.mxu0 0.0
    %1363 = vmatpush1.msra.mxu0 0.0
    %1364 = vmatprep.subr.mxu0 0.0
    %1365 = vmatpush1.msra.mxu0 0.0
    %1366 = vmatprep.subr.mxu0 0.0
    %1367 = vmatpush1.msra.mxu0 0.0
    %1368 = vmatprep.subr.mxu0 0.0
    %1369 = vmatpush1.msra.mxu0 0.0
    %1370 = vmatprep.subr.mxu0 0.0
    %1371 = vmatpush1.msra.mxu0 0.0
    %1372 = vmatprep.subr.mxu0 0.0
    %1373 = vmatpush1.msra.mxu0 0.0
    %1374 = vmatprep.subr.mxu0 0.0
    %1375 = vmatpush1.msra.mxu0 0.0
    %1376 = vmatprep.subr.mxu0 0.0
    %1377 = vmatpush1.msra.mxu0 0.0
    %1378 = vmatprep.subr.mxu0 0.0
    %1379 = vmatpush1.msra.mxu0 0.0
    %1380 = vmatprep.subr.mxu0 0.0
    %1381 = vmatpush1.msra.mxu0 0.0
    %1382 = vmatprep.subr.mxu0 0.0
    %1383 = vmatpush1.msra.mxu0 0.0
    %1384 = vmatprep.subr.mxu0 0.0
    %1385 = vmatpush1.msra.mxu0 0.0
    %1386 = vmatprep.subr.mxu0 0.0
    %1387 = vmatpush1.msra.mxu0 0.0
    %1388 = vmatprep.mubr.f32.mxu0 0.0
    %1389 = vmatmul.mubr.f32.gmra.mrb[0].mxu0 %v1322
    %v1390 = vpop.f32.mrb[0].mxu0
    %v1391 = vadd.f32 0.0, %v1390
    %v1392 = vpop.f32.mrb[0].mxu0
    %1393 = vdwg.mxu0
    %1395 = vrot.lane.b32.xlu0 %v953, 32
    %v1396 = vpop.permute.xlu0 %1395
    %1399 = vrot.lane.b32.xlu0 %v1026, 64
    %v1400 = vpop.permute.xlu0 %1399
    %1403 = vrot.lane.b32.xlu0 %v1099, 96
    %v1404 = vpop.permute.xlu0 %1403
    %1407 = vrot.lane.b32.xlu0 %v1245, 32
    %v1408 = vpop.permute.xlu0 %1407
    %1411 = vrot.lane.b32.xlu0 %v1318, 64
    %v1412 = vpop.permute.xlu0 %1411
    %1415 = vrot.lane.b32.xlu0 %v1391, 96
    %v1416 = vpop.permute.xlu0 %1415
    %v1418 = vsel %vm80, %v880, %v1396
    %vm1419 = vcmask 523264
    %v1420 = vsel %vm1419, %v1418, %v1400
    %vm1421 = vcmask 785408
    %v1422 = vsel %vm1421, %v1420, %v1404
    %v1423 = vsel %vm80, %v1172, %v1408
    %v1424 = vsel %vm1419, %v1423, %v1412
    %v1425 = vsel %vm1421, %v1424, %v1416
    %1426 = vst [vmem:[#allocation8] sm:$0xff] %v1422
    %1427 = vst [vmem:[#allocation8 + $0x8] sm:$0xff] %v1425
    // Predicated region
    $region26: #{tpu_custom_call.1} parent=1 // pred_check
      _
    $region27: #{tpu_custom_call.1} parent=1 // pred_check_branch
      %1429 = sbr.rel (0) target = $region29
    $region28: #{tpu_custom_call.1} parent=1 // pred_region
      %s1431 = ssub.s32 256, 256
      %1432 = vsyncadd [#allocation4], %s1431
      %s1434 = sshll.u32 [#allocation8], 4
      %s1435 = int_to_ptr.vmem [resolvable:$true] %s1434
      %1437 = dma.vmem_to_hbm [thread:$0]  %s1435, 256, %s3, [#allocation4]
    $region29: #{tpu_custom_call.1} parent=1 // pred_fallthru
      _
    // Predicated region
    $region30: #{tpu_custom_call.1} parent=1 // pred_check
      _
    $region31: #{tpu_custom_call.1} parent=1 // pred_check_branch
      %1439 = sbr.rel (0) target = $region33
    $region32: #{tpu_custom_call.1} parent=1 // pred_region
      %1440 = dma.done [#allocation4], 256
    $region33: #{tpu_custom_call.1} parent=1 // pred_fallthru
      _
    %1441 = vsyncpa [#allocation3], 1
    %1442 = vsyncpa [#allocation6], 1
    %1443 = vsyncpa [#allocation4], 1

</llo_original>
